<compile_context>
chip_gen: v7x
topology: tpu7x:2x2x1
jax: 0.10.0
libtpu: 0.0.40
codegen_flags: <defaults>
</compile_context>

<pallas_src>
import jax
import jax.numpy as jnp
from jax.experimental import pallas as pl
from jax.experimental.pallas import tpu as pltpu

# ----------------------------- sizes (small, synthetic) -----------------------
V = 256        # hand vertices (real MANO: 778)
NJ = 21        # hand joints
NJ_PAD = 128   # lane-dense padded joint dim (sliced back to NJ in the wrapper)
NB = 10        # shape betas
NP = 15 * 9    # pose feature (15 local rotmats, flattened, minus identity)
NBP = NB + NP  # fused blend-feature width (145)
VO = 256       # object vertices
N_OBJ = 3      # objects in the synthetic bank
N_HANDS = 2    # right + left MANO heads fused into one launch

OBJ_NAME_TO_IDX = {"box": 0, "laptop": 1, "scissors": 2}


# ----------------------------- glue: Rodrigues ---------------------------------
def axis_angle_to_rotmat(aa):
    """aa: (..., 3) axis-angle -> (..., 3, 3) rotation matrix (plain JAX glue)."""
    theta = jnp.linalg.norm(aa, axis=-1, keepdims=True)            # (..., 1)
    k = aa / (theta + 1e-8)
    kx, ky, kz = k[..., 0], k[..., 1], k[..., 2]
    zero = jnp.zeros_like(kx)
    Km = jnp.stack(
        [
            jnp.stack([zero, -kz, ky], axis=-1),
            jnp.stack([kz, zero, -kx], axis=-1),
            jnp.stack([-ky, kx, zero], axis=-1),
        ],
        axis=-2,
    )                                                               # (..., 3, 3)
    eye = jnp.eye(3, dtype=aa.dtype)
    st = jnp.sin(theta)[..., None]
    ct = jnp.cos(theta)[..., None]
    return eye + st * Km + (1.0 - ct) * jnp.matmul(Km, Km)


def weak_to_full_cam_t(cam_wp, focal, img_res):
    """Weak-perspective (s, tx, ty) -> full translation (tx, ty, tz). Pure JAX."""
    s = cam_wp[:, 0]
    tx = cam_wp[:, 1]
    ty = cam_wp[:, 2]
    tz = (2.0 * focal) / (img_res * s + 1e-9)
    return jnp.stack([tx, ty, tz], axis=-1).astype(jnp.float32)     # (B, 3)


# ----------------------------- Pallas kernels ---------------------------------
def _make_mano_kernel(batch):
    """Both MANO heads share this kernel; grid=(N_HANDS,), one head per step."""

    def kernel(bp_ref, rot_ref, camt_ref, k_ref, vt_ref, blend_ref, jrT_ref,
               v3d_ref, j3d_ref, v2d_ref, j2d_ref):
        f32 = jnp.float32

        # fused blend-shape + pose-corrective matmul: (B, NB+NP) @ (NB+NP, 3V)
        off = jnp.dot(bp_ref[...], blend_ref[...], preferred_element_type=f32)
        vt = vt_ref[...]                                   # (3, V)
        vx = vt[0:1, :] + off[:, 0 * V:1 * V]              # (B, V)
        vy = vt[1:2, :] + off[:, 1 * V:2 * V]
        vz = vt[2:3, :] + off[:, 2 * V:3 * V]

        # fused joint regression: one (3B, V) @ (V, NJ_PAD) matmul
        vstack = jnp.concatenate([vx, vy, vz], axis=0)     # (3B, V)
        jstack = jnp.dot(vstack, jrT_ref[...], preferred_element_type=f32)
        jx = jstack[0 * batch:1 * batch, :]                # (B, NJ_PAD)
        jy = jstack[1 * batch:2 * batch, :]
        jz = jstack[2 * batch:3 * batch, :]

        # global rotation, vectorized over the batch via (B, 1) lane slices
        r = rot_ref[...]                                   # (B, 9)

        def rc(i):
            return r[:, i:i + 1]

        wx = rc(0) * vx + rc(1) * vy + rc(2) * vz
        wy = rc(3) * vx + rc(4) * vy + rc(5) * vz
        wz = rc(6) * vx + rc(7) * vy + rc(8) * vz
        jwx = rc(0) * jx + rc(1) * jy + rc(2) * jz
        jwy = rc(3) * jx + rc(4) * jy + rc(5) * jz
        jwz = rc(6) * jx + rc(7) * jy + rc(8) * jz

        # full-perspective camera translation (precomputed in the wrapper)
        t = camt_ref[...]                                  # (B, 3)
        tx, ty, tz = t[:, 0:1], t[:, 1:2], t[:, 2:3]
        xc, yc, zc = wx + tx, wy + ty, wz + tz
        jxc, jyc, jzc = jwx + tx, jwy + ty, jwz + tz

        # perspective projection with per-sample intrinsics (B, 9)
        k = k_ref[...]

        def kc(i):
            return k[:, i:i + 1]

        def proj(x, y, z):
            px = kc(0) * x + kc(1) * y + kc(2) * z
            py = kc(3) * x + kc(4) * y + kc(5) * z
            pz = kc(6) * x + kc(7) * y + kc(8) * z
            inv = pl.reciprocal(pz, approx=True)           # EUP, frees VALU
            return px * inv, py * inv

        vu, vv = proj(xc, yc, zc)
        ju, jv = proj(jxc, jyc, jzc)

        # direct, lane-dense row stores (coordinate-major output layout)
        v3d_ref[0] = xc
        v3d_ref[1] = yc
        v3d_ref[2] = zc
        j3d_ref[0] = jxc
        j3d_ref[1] = jyc
        j3d_ref[2] = jzc
        v2d_ref[0] = vu
        v2d_ref[1] = vv
        j2d_ref[0] = ju
        j2d_ref[1] = jv

    return kernel


def _make_arti_kernel():
    def kernel(angle_ref, rot_ref, camt_ref, k_ref, obj_ref, mask_ref,
               v3d_ref, v2d_ref):
        # object vertices, coordinate-major: obj_ref is (3, B, VO)
        ox = obj_ref[0]                                    # (B, VO)
        oy = obj_ref[1]
        oz = obj_ref[2]

        # articulation: rotate "top" part about local z-axis by radian angle,
        # vectorized over the batch (cos/sin broadcast from (B, 1))
        ang = angle_ref[...]                               # (B, 1)
        ca = jnp.cos(ang)
        sa = jnp.sin(ang)
        top = mask_ref[...] > 0.5                          # (B, VO)
        ax = ca * ox - sa * oy
        ay = sa * ox + ca * oy
        ox = jnp.where(top, ax, ox)
        oy = jnp.where(top, ay, oy)

        # global object rotation via (B, 1) lane slices of flattened R
        r = rot_ref[...]                                   # (B, 9)

        def rc(i):
            return r[:, i:i + 1]

        wx = rc(0) * ox + rc(1) * oy + rc(2) * oz
        wy = rc(3) * ox + rc(4) * oy + rc(5) * oz
        wz = rc(6) * ox + rc(7) * oy + rc(8) * oz

        # translation (precomputed full-perspective t)
        t = camt_ref[...]                                  # (B, 3)
        xc = wx + t[:, 0:1]
        yc = wy + t[:, 1:2]
        zc = wz + t[:, 2:3]

        # projection
        k = k_ref[...]                                     # (B, 9)

        def kc(i):
            return k[:, i:i + 1]

        px = kc(0) * xc + kc(1) * yc + kc(2) * zc
        py = kc(3) * xc + kc(4) * yc + kc(5) * zc
        pz = kc(6) * xc + kc(7) * yc + kc(8) * zc
        inv = pl.reciprocal(pz, approx=True)

        v3d_ref[0] = xc
        v3d_ref[1] = yc
        v3d_ref[2] = zc
        v2d_ref[0] = px * inv
        v2d_ref[1] = py * inv

    return kernel


# ----------------------------- wrappers ----------------------------------------
def _pose_shape_feature(rotmat, shape):
    """rotmat: (B, 16, 3, 3), shape: (B, NB) -> fused (B, NB+NP) blend feature."""
    b = rotmat.shape[0]
    eye = jnp.eye(3, dtype=rotmat.dtype)
    pose_feat = (rotmat[:, 1:] - eye).reshape(b, NP)
    return jnp.concatenate(
        [shape.reshape(b, NB), pose_feat], axis=-1).astype(jnp.float32)


def mano_heads_forward(rotmat_r, shape_r, cam_t_r,
                       rotmat_l, shape_l, cam_t_l,
                       K, params):
    """Fused right+left MANO heads. One pallas_call, grid over the 2 heads."""
    B = rotmat_r.shape[0]
    H = N_HANDS

    bp = jnp.stack([_pose_shape_feature(rotmat_r, shape_r),
                    _pose_shape_feature(rotmat_l, shape_l)], axis=0)   # (H, B, 145)
    rot9 = jnp.stack([rotmat_r[:, 0].reshape(B, 9),
                      rotmat_l[:, 0].reshape(B, 9)], axis=0).astype(jnp.float32)
    camt = jnp.stack([cam_t_r, cam_t_l], axis=0)                       # (H, B, 3)
    k9 = K.reshape(B, 9).astype(jnp.float32)                           # shared

    kernel = _make_mano_kernel(B)

    out_shape = (
        jax.ShapeDtypeStruct((H, 3, B, V), jnp.float32),
        jax.ShapeDtypeStruct((H, 3, B, NJ_PAD), jnp.float32),
        jax.ShapeDtypeStruct((H, 2, B, V), jnp.float32),
        jax.ShapeDtypeStruct((H, 2, B, NJ_PAD), jnp.float32),
    )

    def head_spec(shape):
        # leading head axis squeezed; whole per-head block resident in VMEM
        return pl.BlockSpec((None,) + shape, lambda h: (h,) + (0,) * len(shape))

    in_specs = [
        head_spec((B, NBP)),                      # fused betas|pose feature
        head_spec((B, 9)),                        # global R (flattened)
        head_spec((B, 3)),                        # full camera translation
        pl.BlockSpec((B, 9), lambda h: (0, 0)),   # shared intrinsics
        head_spec((3, V)),                        # v_template
        head_spec((NBP, 3 * V)),                  # [shapedirs; posedirs]
        head_spec((V, NJ_PAD)),                   # padded joint regressor
    ]
    out_specs = (
        head_spec((3, B, V)),
        head_spec((3, B, NJ_PAD)),
        head_spec((2, B, V)),
        head_spec((2, B, NJ_PAD)),
    )

    v3d, j3d, v2d, j2d = pl.pallas_call(
        kernel,
        out_shape=out_shape,
        grid=(H,),
        in_specs=in_specs,
        out_specs=out_specs,
        compiler_params=pltpu.CompilerParams(
            dimension_semantics=("parallel",)),   # heads are independent
    )(bp, rot9, camt, k9,
      params["v_template"], params["blenddirs"], params["J_regressor_T_pad"])

    def head_out(h, cam_t_full):
        return {
            "vertices.cam": jnp.transpose(v3d[h], (1, 0, 2)),            # (B, 3, V)
            "joints.cam": jnp.transpose(j3d[h, :, :, :NJ], (1, 0, 2)),   # (B, 3, NJ)
            "vertices2d": jnp.transpose(v2d[h], (1, 0, 2)),              # (B, 2, V)
            "joints2d": jnp.transpose(j2d[h, :, :, :NJ], (1, 0, 2)),     # (B, 2, NJ)
            "cam_t.full": cam_t_full,                                    # (B, 3)
        }

    return head_out(0, cam_t_r), head_out(1, cam_t_l)


def arti_head_forward(rot, angle, query_idx, cam_t_full, K, params):
    """rot: (B,3) axis-angle, angle: (B,1) radian, query_idx: (B,) int."""
    B = rot.shape[0]
    R = axis_angle_to_rotmat(rot).astype(jnp.float32)       # glue Rodrigues
    rot9 = R.reshape(B, 9)
    obj_v = params["obj_v_bank"][query_idx]                 # (B, 3, VO)
    obj_cbf = jnp.transpose(obj_v, (1, 0, 2))               # (3, B, VO)
    mask = params["obj_mask_bank"][query_idx]               # (B, VO)
    k9 = K.reshape(B, 9).astype(jnp.float32)
    angle2 = angle.reshape(B, 1).astype(jnp.float32)

    vmem = pl.BlockSpec(memory_space=pltpu.MemorySpace.VMEM)
    v3d, v2d = pl.pallas_call(
        _make_arti_kernel(),
        out_shape=(jax.ShapeDtypeStruct((3, B, VO), jnp.float32),
                   jax.ShapeDtypeStruct((2, B, VO), jnp.float32)),
        in_specs=[vmem] * 6,
        out_specs=(vmem, vmem),
    )(angle2, rot9, cam_t_full, k9, obj_cbf, mask)

    return {
        "vertices.cam": jnp.transpose(v3d, (1, 0, 2)),      # (B, 3, VO)
        "vertices2d": jnp.transpose(v2d, (1, 0, 2)),        # (B, 2, VO)
        "cam_t.full": cam_t_full,
    }


# ----------------------------- parameter init ----------------------------------
def _init_mano_head_params(key):
    k1, k2, k3, k4 = jax.random.split(key, 4)
    v_template = (jax.random.normal(k1, (3, V)) * 0.05).astype(jnp.float32)
    shapedirs = (jax.random.normal(k2, (NB, 3 * V)) * 0.01).astype(jnp.float32)
    posedirs = (jax.random.normal(k3, (NP, 3 * V)) * 0.005).astype(jnp.float32)
    jr = jax.random.uniform(k4, (V, NJ), dtype=jnp.float32)
    jr = jr / jnp.sum(jr, axis=0, keepdims=True)            # convex joint regressor
    # fused blend weights + lane-dense padded joint regressor (built once, host side)
    blenddirs = jnp.concatenate([shapedirs, posedirs], axis=0)          # (145, 3V)
    jr_pad = jnp.zeros((V, NJ_PAD), jnp.float32).at[:, :NJ].set(jr)     # (V, 128)
    return {"v_template": v_template, "blenddirs": blenddirs,
            "J_regressor_T_pad": jr_pad}


def init_mano_params(key_r, key_l):
    p_r = _init_mano_head_params(key_r)
    p_l = _init_mano_head_params(key_l)
    return {name: jnp.stack([p_r[name], p_l[name]], axis=0) for name in p_r}


def init_arti_params(key):
    obj_v_bank = (jax.random.normal(key, (N_OBJ, 3, VO)) * 0.08).astype(jnp.float32)
    top = (jnp.arange(VO) < (VO // 2)).astype(jnp.float32)  # "top" part mask
    obj_mask_bank = jnp.tile(top[None, :], (N_OBJ, 1))      # (N_OBJ, VO)
    return {"obj_v_bank": obj_v_bank, "obj_mask_bank": obj_mask_bank}


# ----------------------------- Regressor ----------------------------------------
class RegressorPallas:
    def __init__(self, focal_length, img_res, key):
        self.focal_length = float(focal_length)
        self.img_res = float(img_res)
        kr, kl, ko = jax.random.split(key, 3)
        self.mano_params = init_mano_params(kr, kl)
        self.arti_params = init_arti_params(ko)

    def __call__(self, hmr_output_r, hmr_output_l, hmr_output_o, meta_info):
        query_names = meta_info["query_names"]
        K = meta_info["intrinsics"]

        # weak-perspective -> full translation: pure scalar math, wrapper-side
        cam_t_r = weak_to_full_cam_t(hmr_output_r["cam_t.wp"],
                                     self.focal_length, self.img_res)
        cam_t_l = weak_to_full_cam_t(hmr_output_l["cam_t.wp"],
                                     self.focal_length, self.img_res)
        cam_t_o = weak_to_full_cam_t(hmr_output_o["cam_t.wp"],
                                     self.focal_length, self.img_res)

        mano_output_r, mano_output_l = mano_heads_forward(
            hmr_output_r["pose"], hmr_output_r["shape"], cam_t_r,
            hmr_output_l["pose"], hmr_output_l["shape"], cam_t_l,
            K, self.mano_params)

        query_idx = jnp.array([OBJ_NAME_TO_IDX[n] for n in query_names],
                              dtype=jnp.int32)
        arti_output = arti_head_forward(
            hmr_output_o["rot"], hmr_output_o["radian"], query_idx, cam_t_o, K,
            self.arti_params)

        return mano_output_r, mano_output_l, arti_output


# ----------------------------- main ---------------------------------------------
if __name__ == "__main__":
    B = 2
    focal_length = 1000.0
    img_res = 224

    key = jax.random.PRNGKey(0)
    (k_params, k_pr, k_pl, k_sr, k_sl, k_cr, k_cl,
     k_or, k_oa, k_oc) = jax.random.split(key, 10)

    regressor = RegressorPallas(focal_length, img_res, k_params)

    def make_hand(k_pose, k_shape, k_cam):
        aa = jax.random.normal(k_pose, (B, 16, 3)) * 0.2
        pose = axis_angle_to_rotmat(aa).astype(jnp.float32)        # (B,16,3,3)
        shape = (jax.random.normal(k_shape, (B, NB)) * 0.5).astype(jnp.float32)
        cam = jnp.concatenate(
            [0.8 + 0.2 * jax.random.uniform(k_cam, (B, 1)),
             jax.random.normal(k_cam, (B, 2)) * 0.05], axis=-1).astype(jnp.float32)
        return {"pose": pose, "shape": shape, "cam_t.wp": cam}

    hmr_output_r = make_hand(k_pr, k_sr, k_cr)
    hmr_output_l = make_hand(k_pl, k_sl, k_cl)

    hmr_output_o = {
        "rot": (jax.random.normal(k_or, (B, 3)) * 0.3).astype(jnp.float32),
        "radian": (jax.random.uniform(k_oa, (B, 1)) * 1.5).astype(jnp.float32),
        "cam_t.wp": jnp.concatenate(
            [0.8 + 0.2 * jax.random.uniform(k_oc, (B, 1)),
             jax.random.normal(k_oc, (B, 2)) * 0.05], axis=-1).astype(jnp.float32),
    }

    Kmat = jnp.array([[focal_length, 0.0, img_res / 2.0],
                      [0.0, focal_length, img_res / 2.0],
                      [0.0, 0.0, 1.0]], dtype=jnp.float32)
    meta_info = {
        "query_names": ["box", "laptop"][:B],
        "intrinsics": jnp.tile(Kmat[None], (B, 1, 1)),
    }

    outputs = regressor(hmr_output_r, hmr_output_l, hmr_output_o, meta_info)
    jax.block_until_ready(outputs)
    print("KERNEL_OK")
</pallas_src>

<mosaic_0001>
module attributes {stable_mosaic.version = 11 : i64} {
  func.func @kernel(%arg0: i32, %arg1: memref<1x2x145xf32, #tpu.memory_space<vmem>>, %arg2: memref<1x2x9xf32, #tpu.memory_space<vmem>>, %arg3: memref<1x2x3xf32, #tpu.memory_space<vmem>>, %arg4: memref<2x9xf32, #tpu.memory_space<vmem>>, %arg5: memref<1x3x256xf32, #tpu.memory_space<vmem>>, %arg6: memref<1x145x768xf32, #tpu.memory_space<vmem>>, %arg7: memref<1x256x128xf32, #tpu.memory_space<vmem>>, %arg8: memref<1x3x2x256xf32, #tpu.memory_space<vmem>>, %arg9: memref<1x3x2x128xf32, #tpu.memory_space<vmem>>, %arg10: memref<1x2x2x256xf32, #tpu.memory_space<vmem>>, %arg11: memref<1x2x2x128xf32, #tpu.memory_space<vmem>>) attributes {dimension_semantics = [#tpu.dimension_semantics<parallel>], iteration_bounds = array<i64: 2>, scalar_prefetch = 0 : i64, scratch_operands = 0 : i64, tpu.core_type = #tpu.core_type<tc>, window_params = [{transform_indices = @transform_0, window_bounds = array<i64: 1, 2, 145>}, {transform_indices = @transform_1, window_bounds = array<i64: 1, 2, 9>}, {transform_indices = @transform_2, window_bounds = array<i64: 1, 2, 3>}, {pipeline_mode = #tpu.pipeline_mode<synchronous>, transform_indices = @transform_3, window_bounds = array<i64: 2, 9>}, {transform_indices = @transform_4, window_bounds = array<i64: 1, 3, 256>}, {transform_indices = @transform_5, window_bounds = array<i64: 1, 145, 768>}, {transform_indices = @transform_6, window_bounds = array<i64: 1, 256, 128>}, {transform_indices = @transform_7, window_bounds = array<i64: 1, 3, 2, 256>}, {transform_indices = @transform_8, window_bounds = array<i64: 1, 3, 2, 128>}, {transform_indices = @transform_9, window_bounds = array<i64: 1, 2, 2, 256>}, {transform_indices = @transform_10, window_bounds = array<i64: 1, 2, 2, 128>}]} {
    %c0 = arith.constant 0 : index
    %c0_0 = arith.constant 0 : index
    %c0_1 = arith.constant 0 : index
    %0 = vector.load %arg1[%c0, %c0_0, %c0_1] : memref<1x2x145xf32, #tpu.memory_space<vmem>>, vector<1x2x145xf32>
    %1 = vector.shape_cast %0 : vector<1x2x145xf32> to vector<2x145xf32>
    %c0_2 = arith.constant 0 : index
    %c0_3 = arith.constant 0 : index
    %c0_4 = arith.constant 0 : index
    %2 = vector.load %arg6[%c0_2, %c0_3, %c0_4] : memref<1x145x768xf32, #tpu.memory_space<vmem>>, vector<1x145x768xf32>
    %3 = vector.shape_cast %2 : vector<1x145x768xf32> to vector<145x768xf32>
    %cst = arith.constant dense<0.000000e+00> : vector<2x768xf32>
    %4 = tpu.matmul %1, %3, %cst {dimension_numbers = #tpu.dot_dimension_numbers<[1], [0], [0], [1], [0, 0, 1, 1], [], []>} : vector<2x145xf32>, vector<145x768xf32>, vector<2x768xf32> -> vector<2x768xf32>
    %c0_5 = arith.constant 0 : index
    %c0_6 = arith.constant 0 : index
    %c0_7 = arith.constant 0 : index
    %5 = vector.load %arg5[%c0_5, %c0_6, %c0_7] : memref<1x3x256xf32, #tpu.memory_space<vmem>>, vector<1x3x256xf32>
    %6 = vector.shape_cast %5 : vector<1x3x256xf32> to vector<3x256xf32>
    %7 = vector.extract_strided_slice %6 {offsets = [0, 0], sizes = [1, 256], strides = [1, 1]} : vector<3x256xf32> to vector<1x256xf32>
    %8 = vector.extract_strided_slice %4 {offsets = [0, 0], sizes = [2, 256], strides = [1, 1]} : vector<2x768xf32> to vector<2x256xf32>
    %9 = vector.broadcast %7 : vector<1x256xf32> to vector<2x256xf32>
    %10 = arith.addf %9, %8 : vector<2x256xf32>
    %11 = vector.extract_strided_slice %6 {offsets = [1, 0], sizes = [1, 256], strides = [1, 1]} : vector<3x256xf32> to vector<1x256xf32>
    %12 = vector.extract_strided_slice %4 {offsets = [0, 256], sizes = [2, 256], strides = [1, 1]} : vector<2x768xf32> to vector<2x256xf32>
    %13 = vector.broadcast %11 : vector<1x256xf32> to vector<2x256xf32>
    %14 = arith.addf %13, %12 : vector<2x256xf32>
    %15 = vector.extract_strided_slice %6 {offsets = [2, 0], sizes = [1, 256], strides = [1, 1]} : vector<3x256xf32> to vector<1x256xf32>
    %16 = vector.extract_strided_slice %4 {offsets = [0, 512], sizes = [2, 256], strides = [1, 1]} : vector<2x768xf32> to vector<2x256xf32>
    %17 = vector.broadcast %15 : vector<1x256xf32> to vector<2x256xf32>
    %18 = arith.addf %17, %16 : vector<2x256xf32>
    %19 = tpu.concatenate %10, %14, %18 in 0 : vector<2x256xf32>, vector<2x256xf32>, vector<2x256xf32> -> vector<6x256xf32>
    %c0_8 = arith.constant 0 : index
    %c0_9 = arith.constant 0 : index
    %c0_10 = arith.constant 0 : index
    %20 = vector.load %arg7[%c0_8, %c0_9, %c0_10] : memref<1x256x128xf32, #tpu.memory_space<vmem>>, vector<1x256x128xf32>
    %21 = vector.shape_cast %20 : vector<1x256x128xf32> to vector<256x128xf32>
    %cst_11 = arith.constant dense<0.000000e+00> : vector<6x128xf32>
    %22 = tpu.matmul %19, %21, %cst_11 {dimension_numbers = #tpu.dot_dimension_numbers<[1], [0], [0], [1], [0, 0, 1, 1], [], []>} : vector<6x256xf32>, vector<256x128xf32>, vector<6x128xf32> -> vector<6x128xf32>
    %23 = vector.extract_strided_slice %22 {offsets = [0, 0], sizes = [2, 128], strides = [1, 1]} : vector<6x128xf32> to vector<2x128xf32>
    %24 = vector.extract_strided_slice %22 {offsets = [2, 0], sizes = [2, 128], strides = [1, 1]} : vector<6x128xf32> to vector<2x128xf32>
    %25 = vector.extract_strided_slice %22 {offsets = [4, 0], sizes = [2, 128], strides = [1, 1]} : vector<6x128xf32> to vector<2x128xf32>
    %c0_12 = arith.constant 0 : index
    %c0_13 = arith.constant 0 : index
    %c0_14 = arith.constant 0 : index
    %26 = vector.load %arg2[%c0_12, %c0_13, %c0_14] : memref<1x2x9xf32, #tpu.memory_space<vmem>>, vector<1x2x9xf32>
    %27 = vector.shape_cast %26 : vector<1x2x9xf32> to vector<2x9xf32>
    %28 = vector.extract_strided_slice %27 {offsets = [0, 0], sizes = [2, 1], strides = [1, 1]} : vector<2x9xf32> to vector<2x1xf32>
    %29 = vector.broadcast %28 : vector<2x1xf32> to vector<2x256xf32>
    %30 = arith.mulf %29, %10 : vector<2x256xf32>
    %31 = vector.extract_strided_slice %27 {offsets = [0, 1], sizes = [2, 1], strides = [1, 1]} : vector<2x9xf32> to vector<2x1xf32>
    %32 = vector.broadcast %31 : vector<2x1xf32> to vector<2x256xf32>
    %33 = arith.mulf %32, %14 : vector<2x256xf32>
    %34 = arith.addf %30, %33 : vector<2x256xf32>
    %35 = vector.extract_strided_slice %27 {offsets = [0, 2], sizes = [2, 1], strides = [1, 1]} : vector<2x9xf32> to vector<2x1xf32>
    %36 = vector.broadcast %35 : vector<2x1xf32> to vector<2x256xf32>
    %37 = arith.mulf %36, %18 : vector<2x256xf32>
    %38 = arith.addf %34, %37 : vector<2x256xf32>
    %39 = vector.extract_strided_slice %27 {offsets = [0, 3], sizes = [2, 1], strides = [1, 1]} : vector<2x9xf32> to vector<2x1xf32>
    %40 = vector.broadcast %39 : vector<2x1xf32> to vector<2x256xf32>
    %41 = arith.mulf %40, %10 : vector<2x256xf32>
    %42 = vector.extract_strided_slice %27 {offsets = [0, 4], sizes = [2, 1], strides = [1, 1]} : vector<2x9xf32> to vector<2x1xf32>
    %43 = vector.broadcast %42 : vector<2x1xf32> to vector<2x256xf32>
    %44 = arith.mulf %43, %14 : vector<2x256xf32>
    %45 = arith.addf %41, %44 : vector<2x256xf32>
    %46 = vector.extract_strided_slice %27 {offsets = [0, 5], sizes = [2, 1], strides = [1, 1]} : vector<2x9xf32> to vector<2x1xf32>
    %47 = vector.broadcast %46 : vector<2x1xf32> to vector<2x256xf32>
    %48 = arith.mulf %47, %18 : vector<2x256xf32>
    %49 = arith.addf %45, %48 : vector<2x256xf32>
    %50 = vector.extract_strided_slice %27 {offsets = [0, 6], sizes = [2, 1], strides = [1, 1]} : vector<2x9xf32> to vector<2x1xf32>
    %51 = vector.broadcast %50 : vector<2x1xf32> to vector<2x256xf32>
    %52 = arith.mulf %51, %10 : vector<2x256xf32>
    %53 = vector.extract_strided_slice %27 {offsets = [0, 7], sizes = [2, 1], strides = [1, 1]} : vector<2x9xf32> to vector<2x1xf32>
    %54 = vector.broadcast %53 : vector<2x1xf32> to vector<2x256xf32>
    %55 = arith.mulf %54, %14 : vector<2x256xf32>
    %56 = arith.addf %52, %55 : vector<2x256xf32>
    %57 = vector.extract_strided_slice %27 {offsets = [0, 8], sizes = [2, 1], strides = [1, 1]} : vector<2x9xf32> to vector<2x1xf32>
    %58 = vector.broadcast %57 : vector<2x1xf32> to vector<2x256xf32>
    %59 = arith.mulf %58, %18 : vector<2x256xf32>
    %60 = arith.addf %56, %59 : vector<2x256xf32>
    %61 = vector.extract_strided_slice %27 {offsets = [0, 0], sizes = [2, 1], strides = [1, 1]} : vector<2x9xf32> to vector<2x1xf32>
    %62 = vector.broadcast %61 : vector<2x1xf32> to vector<2x128xf32>
    %63 = arith.mulf %62, %23 : vector<2x128xf32>
    %64 = vector.extract_strided_slice %27 {offsets = [0, 1], sizes = [2, 1], strides = [1, 1]} : vector<2x9xf32> to vector<2x1xf32>
    %65 = vector.broadcast %64 : vector<2x1xf32> to vector<2x128xf32>
    %66 = arith.mulf %65, %24 : vector<2x128xf32>
    %67 = arith.addf %63, %66 : vector<2x128xf32>
    %68 = vector.extract_strided_slice %27 {offsets = [0, 2], sizes = [2, 1], strides = [1, 1]} : vector<2x9xf32> to vector<2x1xf32>
    %69 = vector.broadcast %68 : vector<2x1xf32> to vector<2x128xf32>
    %70 = arith.mulf %69, %25 : vector<2x128xf32>
    %71 = arith.addf %67, %70 : vector<2x128xf32>
    %72 = vector.extract_strided_slice %27 {offsets = [0, 3], sizes = [2, 1], strides = [1, 1]} : vector<2x9xf32> to vector<2x1xf32>
    %73 = vector.broadcast %72 : vector<2x1xf32> to vector<2x128xf32>
    %74 = arith.mulf %73, %23 : vector<2x128xf32>
    %75 = vector.extract_strided_slice %27 {offsets = [0, 4], sizes = [2, 1], strides = [1, 1]} : vector<2x9xf32> to vector<2x1xf32>
    %76 = vector.broadcast %75 : vector<2x1xf32> to vector<2x128xf32>
    %77 = arith.mulf %76, %24 : vector<2x128xf32>
    %78 = arith.addf %74, %77 : vector<2x128xf32>
    %79 = vector.extract_strided_slice %27 {offsets = [0, 5], sizes = [2, 1], strides = [1, 1]} : vector<2x9xf32> to vector<2x1xf32>
    %80 = vector.broadcast %79 : vector<2x1xf32> to vector<2x128xf32>
    %81 = arith.mulf %80, %25 : vector<2x128xf32>
    %82 = arith.addf %78, %81 : vector<2x128xf32>
    %83 = vector.extract_strided_slice %27 {offsets = [0, 6], sizes = [2, 1], strides = [1, 1]} : vector<2x9xf32> to vector<2x1xf32>
    %84 = vector.broadcast %83 : vector<2x1xf32> to vector<2x128xf32>
    %85 = arith.mulf %84, %23 : vector<2x128xf32>
    %86 = vector.extract_strided_slice %27 {offsets = [0, 7], sizes = [2, 1], strides = [1, 1]} : vector<2x9xf32> to vector<2x1xf32>
    %87 = vector.broadcast %86 : vector<2x1xf32> to vector<2x128xf32>
    %88 = arith.mulf %87, %24 : vector<2x128xf32>
    %89 = arith.addf %85, %88 : vector<2x128xf32>
    %90 = vector.extract_strided_slice %27 {offsets = [0, 8], sizes = [2, 1], strides = [1, 1]} : vector<2x9xf32> to vector<2x1xf32>
    %91 = vector.broadcast %90 : vector<2x1xf32> to vector<2x128xf32>
    %92 = arith.mulf %91, %25 : vector<2x128xf32>
    %93 = arith.addf %89, %92 : vector<2x128xf32>
    %c0_15 = arith.constant 0 : index
    %c0_16 = arith.constant 0 : index
    %c0_17 = arith.constant 0 : index
    %94 = vector.load %arg3[%c0_15, %c0_16, %c0_17] : memref<1x2x3xf32, #tpu.memory_space<vmem>>, vector<1x2x3xf32>
    %95 = vector.shape_cast %94 : vector<1x2x3xf32> to vector<2x3xf32>
    %96 = vector.extract_strided_slice %95 {offsets = [0, 0], sizes = [2, 1], strides = [1, 1]} : vector<2x3xf32> to vector<2x1xf32>
    %97 = vector.extract_strided_slice %95 {offsets = [0, 1], sizes = [2, 1], strides = [1, 1]} : vector<2x3xf32> to vector<2x1xf32>
    %98 = vector.extract_strided_slice %95 {offsets = [0, 2], sizes = [2, 1], strides = [1, 1]} : vector<2x3xf32> to vector<2x1xf32>
    %99 = vector.broadcast %96 : vector<2x1xf32> to vector<2x256xf32>
    %100 = arith.addf %38, %99 : vector<2x256xf32>
    %101 = vector.broadcast %97 : vector<2x1xf32> to vector<2x256xf32>
    %102 = arith.addf %49, %101 : vector<2x256xf32>
    %103 = vector.broadcast %98 : vector<2x1xf32> to vector<2x256xf32>
    %104 = arith.addf %60, %103 : vector<2x256xf32>
    %105 = vector.broadcast %96 : vector<2x1xf32> to vector<2x128xf32>
    %106 = arith.addf %71, %105 : vector<2x128xf32>
    %107 = vector.broadcast %97 : vector<2x1xf32> to vector<2x128xf32>
    %108 = arith.addf %82, %107 : vector<2x128xf32>
    %109 = vector.broadcast %98 : vector<2x1xf32> to vector<2x128xf32>
    %110 = arith.addf %93, %109 : vector<2x128xf32>
    %c0_18 = arith.constant 0 : index
    %c0_19 = arith.constant 0 : index
    %111 = vector.load %arg4[%c0_18, %c0_19] : memref<2x9xf32, #tpu.memory_space<vmem>>, vector<2x9xf32>
    %112 = vector.extract_strided_slice %111 {offsets = [0, 0], sizes = [2, 1], strides = [1, 1]} : vector<2x9xf32> to vector<2x1xf32>
    %113 = vector.broadcast %112 : vector<2x1xf32> to vector<2x256xf32>
    %114 = arith.mulf %113, %100 : vector<2x256xf32>
    %115 = vector.extract_strided_slice %111 {offsets = [0, 1], sizes = [2, 1], strides = [1, 1]} : vector<2x9xf32> to vector<2x1xf32>
    %116 = vector.broadcast %115 : vector<2x1xf32> to vector<2x256xf32>
    %117 = arith.mulf %116, %102 : vector<2x256xf32>
    %118 = arith.addf %114, %117 : vector<2x256xf32>
    %119 = vector.extract_strided_slice %111 {offsets = [0, 2], sizes = [2, 1], strides = [1, 1]} : vector<2x9xf32> to vector<2x1xf32>
    %120 = vector.broadcast %119 : vector<2x1xf32> to vector<2x256xf32>
    %121 = arith.mulf %120, %104 : vector<2x256xf32>
    %122 = arith.addf %118, %121 : vector<2x256xf32>
    %123 = vector.extract_strided_slice %111 {offsets = [0, 3], sizes = [2, 1], strides = [1, 1]} : vector<2x9xf32> to vector<2x1xf32>
    %124 = vector.broadcast %123 : vector<2x1xf32> to vector<2x256xf32>
    %125 = arith.mulf %124, %100 : vector<2x256xf32>
    %126 = vector.extract_strided_slice %111 {offsets = [0, 4], sizes = [2, 1], strides = [1, 1]} : vector<2x9xf32> to vector<2x1xf32>
    %127 = vector.broadcast %126 : vector<2x1xf32> to vector<2x256xf32>
    %128 = arith.mulf %127, %102 : vector<2x256xf32>
    %129 = arith.addf %125, %128 : vector<2x256xf32>
    %130 = vector.extract_strided_slice %111 {offsets = [0, 5], sizes = [2, 1], strides = [1, 1]} : vector<2x9xf32> to vector<2x1xf32>
    %131 = vector.broadcast %130 : vector<2x1xf32> to vector<2x256xf32>
    %132 = arith.mulf %131, %104 : vector<2x256xf32>
    %133 = arith.addf %129, %132 : vector<2x256xf32>
    %134 = vector.extract_strided_slice %111 {offsets = [0, 6], sizes = [2, 1], strides = [1, 1]} : vector<2x9xf32> to vector<2x1xf32>
    %135 = vector.broadcast %134 : vector<2x1xf32> to vector<2x256xf32>
    %136 = arith.mulf %135, %100 : vector<2x256xf32>
    %137 = vector.extract_strided_slice %111 {offsets = [0, 7], sizes = [2, 1], strides = [1, 1]} : vector<2x9xf32> to vector<2x1xf32>
    %138 = vector.broadcast %137 : vector<2x1xf32> to vector<2x256xf32>
    %139 = arith.mulf %138, %102 : vector<2x256xf32>
    %140 = arith.addf %136, %139 : vector<2x256xf32>
    %141 = vector.extract_strided_slice %111 {offsets = [0, 8], sizes = [2, 1], strides = [1, 1]} : vector<2x9xf32> to vector<2x1xf32>
    %142 = vector.broadcast %141 : vector<2x1xf32> to vector<2x256xf32>
    %143 = arith.mulf %142, %104 : vector<2x256xf32>
    %144 = arith.addf %140, %143 : vector<2x256xf32>
    %145 = tpu.reciprocal %144 {approx = true} : vector<2x256xf32> -> vector<2x256xf32>
    %146 = arith.mulf %122, %145 : vector<2x256xf32>
    %147 = arith.mulf %133, %145 : vector<2x256xf32>
    %148 = vector.extract_strided_slice %111 {offsets = [0, 0], sizes = [2, 1], strides = [1, 1]} : vector<2x9xf32> to vector<2x1xf32>
    %149 = vector.broadcast %148 : vector<2x1xf32> to vector<2x128xf32>
    %150 = arith.mulf %149, %106 : vector<2x128xf32>
    %151 = vector.extract_strided_slice %111 {offsets = [0, 1], sizes = [2, 1], strides = [1, 1]} : vector<2x9xf32> to vector<2x1xf32>
    %152 = vector.broadcast %151 : vector<2x1xf32> to vector<2x128xf32>
    %153 = arith.mulf %152, %108 : vector<2x128xf32>
    %154 = arith.addf %150, %153 : vector<2x128xf32>
    %155 = vector.extract_strided_slice %111 {offsets = [0, 2], sizes = [2, 1], strides = [1, 1]} : vector<2x9xf32> to vector<2x1xf32>
    %156 = vector.broadcast %155 : vector<2x1xf32> to vector<2x128xf32>
    %157 = arith.mulf %156, %110 : vector<2x128xf32>
    %158 = arith.addf %154, %157 : vector<2x128xf32>
    %159 = vector.extract_strided_slice %111 {offsets = [0, 3], sizes = [2, 1], strides = [1, 1]} : vector<2x9xf32> to vector<2x1xf32>
    %160 = vector.broadcast %159 : vector<2x1xf32> to vector<2x128xf32>
    %161 = arith.mulf %160, %106 : vector<2x128xf32>
    %162 = vector.extract_strided_slice %111 {offsets = [0, 4], sizes = [2, 1], strides = [1, 1]} : vector<2x9xf32> to vector<2x1xf32>
    %163 = vector.broadcast %162 : vector<2x1xf32> to vector<2x128xf32>
    %164 = arith.mulf %163, %108 : vector<2x128xf32>
    %165 = arith.addf %161, %164 : vector<2x128xf32>
    %166 = vector.extract_strided_slice %111 {offsets = [0, 5], sizes = [2, 1], strides = [1, 1]} : vector<2x9xf32> to vector<2x1xf32>
    %167 = vector.broadcast %166 : vector<2x1xf32> to vector<2x128xf32>
    %168 = arith.mulf %167, %110 : vector<2x128xf32>
    %169 = arith.addf %165, %168 : vector<2x128xf32>
    %170 = vector.extract_strided_slice %111 {offsets = [0, 6], sizes = [2, 1], strides = [1, 1]} : vector<2x9xf32> to vector<2x1xf32>
    %171 = vector.broadcast %170 : vector<2x1xf32> to vector<2x128xf32>
    %172 = arith.mulf %171, %106 : vector<2x128xf32>
    %173 = vector.extract_strided_slice %111 {offsets = [0, 7], sizes = [2, 1], strides = [1, 1]} : vector<2x9xf32> to vector<2x1xf32>
    %174 = vector.broadcast %173 : vector<2x1xf32> to vector<2x128xf32>
    %175 = arith.mulf %174, %108 : vector<2x128xf32>
    %176 = arith.addf %172, %175 : vector<2x128xf32>
    %177 = vector.extract_strided_slice %111 {offsets = [0, 8], sizes = [2, 1], strides = [1, 1]} : vector<2x9xf32> to vector<2x1xf32>
    %178 = vector.broadcast %177 : vector<2x1xf32> to vector<2x128xf32>
    %179 = arith.mulf %178, %110 : vector<2x128xf32>
    %180 = arith.addf %176, %179 : vector<2x128xf32>
    %181 = tpu.reciprocal %180 {approx = true} : vector<2x128xf32> -> vector<2x128xf32>
    %182 = arith.mulf %158, %181 : vector<2x128xf32>
    %183 = arith.mulf %169, %181 : vector<2x128xf32>
    %c0_20 = arith.constant 0 : index
    %c0_21 = arith.constant 0 : index
    %c0_22 = arith.constant 0 : index
    %c0_23 = arith.constant 0 : index
    %184 = vector.load %arg8[%c0_20, %c0_21, %c0_22, %c0_23] : memref<1x3x2x256xf32, #tpu.memory_space<vmem>>, vector<1x1x2x256xf32>
    %185 = vector.shape_cast %184 : vector<1x1x2x256xf32> to vector<2x256xf32>
    %186 = vector.shape_cast %100 : vector<2x256xf32> to vector<1x1x2x256xf32>
    tpu.vector_store %arg8[%c0_20, %c0_21, %c0_22, %c0_23], %186 {strides = array<i32>} : memref<1x3x2x256xf32, #tpu.memory_space<vmem>>, vector<1x1x2x256xf32>,
    %c0_24 = arith.constant 0 : index
    %c1 = arith.constant 1 : index
    %c0_25 = arith.constant 0 : index
    %c0_26 = arith.constant 0 : index
    %187 = vector.load %arg8[%c0_24, %c1, %c0_25, %c0_26] : memref<1x3x2x256xf32, #tpu.memory_space<vmem>>, vector<1x1x2x256xf32>
    %188 = vector.shape_cast %187 : vector<1x1x2x256xf32> to vector<2x256xf32>
    %189 = vector.shape_cast %102 : vector<2x256xf32> to vector<1x1x2x256xf32>
    tpu.vector_store %arg8[%c0_24, %c1, %c0_25, %c0_26], %189 {strides = array<i32>} : memref<1x3x2x256xf32, #tpu.memory_space<vmem>>, vector<1x1x2x256xf32>,
    %c0_27 = arith.constant 0 : index
    %c2 = arith.constant 2 : index
    %c0_28 = arith.constant 0 : index
    %c0_29 = arith.constant 0 : index
    %190 = vector.load %arg8[%c0_27, %c2, %c0_28, %c0_29] : memref<1x3x2x256xf32, #tpu.memory_space<vmem>>, vector<1x1x2x256xf32>
    %191 = vector.shape_cast %190 : vector<1x1x2x256xf32> to vector<2x256xf32>
    %192 = vector.shape_cast %104 : vector<2x256xf32> to vector<1x1x2x256xf32>
    tpu.vector_store %arg8[%c0_27, %c2, %c0_28, %c0_29], %192 {strides = array<i32>} : memref<1x3x2x256xf32, #tpu.memory_space<vmem>>, vector<1x1x2x256xf32>,
    %c0_30 = arith.constant 0 : index
    %c0_31 = arith.constant 0 : index
    %c0_32 = arith.constant 0 : index
    %c0_33 = arith.constant 0 : index
    %193 = vector.load %arg9[%c0_30, %c0_31, %c0_32, %c0_33] : memref<1x3x2x128xf32, #tpu.memory_space<vmem>>, vector<1x1x2x128xf32>
    %194 = vector.shape_cast %193 : vector<1x1x2x128xf32> to vector<2x128xf32>
    %195 = vector.shape_cast %106 : vector<2x128xf32> to vector<1x1x2x128xf32>
    tpu.vector_store %arg9[%c0_30, %c0_31, %c0_32, %c0_33], %195 {strides = array<i32>} : memref<1x3x2x128xf32, #tpu.memory_space<vmem>>, vector<1x1x2x128xf32>,
    %c0_34 = arith.constant 0 : index
    %c1_35 = arith.constant 1 : index
    %c0_36 = arith.constant 0 : index
    %c0_37 = arith.constant 0 : index
    %196 = vector.load %arg9[%c0_34, %c1_35, %c0_36, %c0_37] : memref<1x3x2x128xf32, #tpu.memory_space<vmem>>, vector<1x1x2x128xf32>
    %197 = vector.shape_cast %196 : vector<1x1x2x128xf32> to vector<2x128xf32>
    %198 = vector.shape_cast %108 : vector<2x128xf32> to vector<1x1x2x128xf32>
    tpu.vector_store %arg9[%c0_34, %c1_35, %c0_36, %c0_37], %198 {strides = array<i32>} : memref<1x3x2x128xf32, #tpu.memory_space<vmem>>, vector<1x1x2x128xf32>,
    %c0_38 = arith.constant 0 : index
    %c2_39 = arith.constant 2 : index
    %c0_40 = arith.constant 0 : index
    %c0_41 = arith.constant 0 : index
    %199 = vector.load %arg9[%c0_38, %c2_39, %c0_40, %c0_41] : memref<1x3x2x128xf32, #tpu.memory_space<vmem>>, vector<1x1x2x128xf32>
    %200 = vector.shape_cast %199 : vector<1x1x2x128xf32> to vector<2x128xf32>
    %201 = vector.shape_cast %110 : vector<2x128xf32> to vector<1x1x2x128xf32>
    tpu.vector_store %arg9[%c0_38, %c2_39, %c0_40, %c0_41], %201 {strides = array<i32>} : memref<1x3x2x128xf32, #tpu.memory_space<vmem>>, vector<1x1x2x128xf32>,
    %c0_42 = arith.constant 0 : index
    %c0_43 = arith.constant 0 : index
    %c0_44 = arith.constant 0 : index
    %c0_45 = arith.constant 0 : index
    %202 = vector.load %arg10[%c0_42, %c0_43, %c0_44, %c0_45] : memref<1x2x2x256xf32, #tpu.memory_space<vmem>>, vector<1x1x2x256xf32>
    %203 = vector.shape_cast %202 : vector<1x1x2x256xf32> to vector<2x256xf32>
    %204 = vector.shape_cast %146 : vector<2x256xf32> to vector<1x1x2x256xf32>
    tpu.vector_store %arg10[%c0_42, %c0_43, %c0_44, %c0_45], %204 {strides = array<i32>} : memref<1x2x2x256xf32, #tpu.memory_space<vmem>>, vector<1x1x2x256xf32>,
    %c0_46 = arith.constant 0 : index
    %c1_47 = arith.constant 1 : index
    %c0_48 = arith.constant 0 : index
    %c0_49 = arith.constant 0 : index
    %205 = vector.load %arg10[%c0_46, %c1_47, %c0_48, %c0_49] : memref<1x2x2x256xf32, #tpu.memory_space<vmem>>, vector<1x1x2x256xf32>
    %206 = vector.shape_cast %205 : vector<1x1x2x256xf32> to vector<2x256xf32>
    %207 = vector.shape_cast %147 : vector<2x256xf32> to vector<1x1x2x256xf32>
    tpu.vector_store %arg10[%c0_46, %c1_47, %c0_48, %c0_49], %207 {strides = array<i32>} : memref<1x2x2x256xf32, #tpu.memory_space<vmem>>, vector<1x1x2x256xf32>,
    %c0_50 = arith.constant 0 : index
    %c0_51 = arith.constant 0 : index
    %c0_52 = arith.constant 0 : index
    %c0_53 = arith.constant 0 : index
    %208 = vector.load %arg11[%c0_50, %c0_51, %c0_52, %c0_53] : memref<1x2x2x128xf32, #tpu.memory_space<vmem>>, vector<1x1x2x128xf32>
    %209 = vector.shape_cast %208 : vector<1x1x2x128xf32> to vector<2x128xf32>
    %210 = vector.shape_cast %182 : vector<2x128xf32> to vector<1x1x2x128xf32>
    tpu.vector_store %arg11[%c0_50, %c0_51, %c0_52, %c0_53], %210 {strides = array<i32>} : memref<1x2x2x128xf32, #tpu.memory_space<vmem>>, vector<1x1x2x128xf32>,
    %c0_54 = arith.constant 0 : index
    %c1_55 = arith.constant 1 : index
    %c0_56 = arith.constant 0 : index
    %c0_57 = arith.constant 0 : index
    %211 = vector.load %arg11[%c0_54, %c1_55, %c0_56, %c0_57] : memref<1x2x2x128xf32, #tpu.memory_space<vmem>>, vector<1x1x2x128xf32>
    %212 = vector.shape_cast %211 : vector<1x1x2x128xf32> to vector<2x128xf32>
    %213 = vector.shape_cast %183 : vector<2x128xf32> to vector<1x1x2x128xf32>
    tpu.vector_store %arg11[%c0_54, %c1_55, %c0_56, %c0_57], %213 {strides = array<i32>} : memref<1x2x2x128xf32, #tpu.memory_space<vmem>>, vector<1x1x2x128xf32>,
    return
  }
  func.func @transform_0(%arg0: i32) -> (i32, i32, i32) {
    %c0_i32 = arith.constant 0 : i32
    %c0_i32_0 = arith.constant 0 : i32
    %c0_i32_1 = arith.constant 0 : i32
    return %arg0, %c0_i32, %c0_i32_0 : i32, i32, i32
  }
  func.func @transform_1(%arg0: i32) -> (i32, i32, i32) {
    %c0_i32 = arith.constant 0 : i32
    %c0_i32_0 = arith.constant 0 : i32
    %c0_i32_1 = arith.constant 0 : i32
    return %arg0, %c0_i32, %c0_i32_0 : i32, i32, i32
  }
  func.func @transform_2(%arg0: i32) -> (i32, i32, i32) {
    %c0_i32 = arith.constant 0 : i32
    %c0_i32_0 = arith.constant 0 : i32
    %c0_i32_1 = arith.constant 0 : i32
    return %arg0, %c0_i32, %c0_i32_0 : i32, i32, i32
  }
  func.func @transform_3(%arg0: i32) -> (i32, i32) {
    %c0_i32 = arith.constant 0 : i32
    %c0_i32_0 = arith.constant 0 : i32
    %c0_i32_1 = arith.constant 0 : i32
    return %c0_i32, %c0_i32_0 : i32, i32
  }
  func.func @transform_4(%arg0: i32) -> (i32, i32, i32) {
    %c0_i32 = arith.constant 0 : i32
    %c0_i32_0 = arith.constant 0 : i32
    %c0_i32_1 = arith.constant 0 : i32
    return %arg0, %c0_i32, %c0_i32_0 : i32, i32, i32
  }
  func.func @transform_5(%arg0: i32) -> (i32, i32, i32) {
    %c0_i32 = arith.constant 0 : i32
    %c0_i32_0 = arith.constant 0 : i32
    %c0_i32_1 = arith.constant 0 : i32
    return %arg0, %c0_i32, %c0_i32_0 : i32, i32, i32
  }
  func.func @transform_6(%arg0: i32) -> (i32, i32, i32) {
    %c0_i32 = arith.constant 0 : i32
    %c0_i32_0 = arith.constant 0 : i32
    %c0_i32_1 = arith.constant 0 : i32
    return %arg0, %c0_i32, %c0_i32_0 : i32, i32, i32
  }
  func.func @transform_7(%arg0: i32) -> (i32, i32, i32, i32) {
    %c0_i32 = arith.constant 0 : i32
    %c0_i32_0 = arith.constant 0 : i32
    %c0_i32_1 = arith.constant 0 : i32
    %c0_i32_2 = arith.constant 0 : i32
    return %arg0, %c0_i32, %c0_i32_0, %c0_i32_1 : i32, i32, i32, i32
  }
  func.func @transform_8(%arg0: i32) -> (i32, i32, i32, i32) {
    %c0_i32 = arith.constant 0 : i32
    %c0_i32_0 = arith.constant 0 : i32
    %c0_i32_1 = arith.constant 0 : i32
    %c0_i32_2 = arith.constant 0 : i32
    return %arg0, %c0_i32, %c0_i32_0, %c0_i32_1 : i32, i32, i32, i32
  }
  func.func @transform_9(%arg0: i32) -> (i32, i32, i32, i32) {
    %c0_i32 = arith.constant 0 : i32
    %c0_i32_0 = arith.constant 0 : i32
    %c0_i32_1 = arith.constant 0 : i32
    %c0_i32_2 = arith.constant 0 : i32
    return %arg0, %c0_i32, %c0_i32_0, %c0_i32_1 : i32, i32, i32, i32
  }
  func.func @transform_10(%arg0: i32) -> (i32, i32, i32, i32) {
    %c0_i32 = arith.constant 0 : i32
    %c0_i32_0 = arith.constant 0 : i32
    %c0_i32_1 = arith.constant 0 : i32
    %c0_i32_2 = arith.constant 0 : i32
    return %arg0, %c0_i32, %c0_i32_0, %c0_i32_1 : i32, i32, i32, i32
  }
}

</mosaic_0001>

<llo_original>
// kernel: tpu_custom_call.1
$region0: #{tpu_custom_call.1}
  #allocation0 [shape = 'u32[]', space=smem, size = 0x4, offset = 0x4, fixed_abs, tag = 'smem constant byte address 0x4 - core index']
  #allocation1 [shape = 'u32[144,128]{1,0:T(1,128)}', space=vmem, size = 0x12000, scoped, tag = 'internal scratch']
  %s0 = inlined_call_operand.vmem [shape: f32[2,2,145], index: 0, kind: input, shape index: {}]
  %s1 = inlined_call_operand.vmem [shape: f32[2,2,9], index: 1, kind: input, shape index: {}]
  %s2 = inlined_call_operand.vmem [shape: f32[2,2,3], index: 2, kind: input, shape index: {}]
  %s3 = inlined_call_operand.vmem [shape: f32[2,9], index: 3, kind: input, shape index: {}]
  %s4 = inlined_call_operand.vmem [shape: f32[2,3,256], index: 4, kind: input, shape index: {}]
  %s5 = inlined_call_operand.vmem [shape: f32[2,145,768], index: 5, kind: input, shape index: {}]
  %s6 = inlined_call_operand.vmem [shape: f32[2,256,128], index: 6, kind: input, shape index: {}]
  %s7 = inlined_call_operand.hbm [shape: f32[2,3,2,256], index: 7, kind: output, shape index: {0}]
  %s8 = inlined_call_operand.hbm [shape: f32[2,3,2,128], index: 8, kind: output, shape index: {1}]
  %s9 = inlined_call_operand.hbm [shape: f32[2,2,2,256], index: 9, kind: output, shape index: {2}]
  %s10 = inlined_call_operand.hbm [shape: f32[2,2,2,128], index: 10, kind: output, shape index: {3}]
  %11 = xla_tuple %s7, %s8, %s9, %s10
  %s12 = sld [smem:[#allocation0]]
  $region85: #{tpu_custom_call.1} parent=0
    _
  %s14 = ssub.s32 1, %s12
  %s15 = scalar_select 0, %s14, %s12
  $region1: #{tpu_custom_call.1} parent=0
    #allocation2 [shape = 'u8[12288]{0}', space=vmem, size = 0x3000, scoped, tag = 'output window, operand 0']
    #allocation3 [shape = 's32[2]{0}', space=sflag, size = 0x8, scoped, tag = 'scoped memory for tpu_custom_call.1']
    #allocation4 [shape = 'u8[6144]{0}', space=vmem, size = 0x1800, scoped, tag = 'output window, operand 1']
    #allocation5 [shape = 's32[2]{0}', space=sflag, size = 0x8, scoped, tag = 'scoped memory for tpu_custom_call.1']
    #allocation6 [shape = 'u8[8192]{0}', space=vmem, size = 0x2000, scoped, tag = 'output window, operand 2']
    #allocation7 [shape = 'u8[4096]{0}', space=vmem, size = 0x1000, scoped, tag = 'output window, operand 3']
    #allocation8 [shape = 's32[2]{0}', space=sflag, size = 0x8, scoped, tag = 'scoped memory for tpu_custom_call.1']
    %16 = vsyncpa [#allocation3], 0
    %s17 = scalar_lea.sflag [#allocation3], 1
    %18 = vsyncpa %s17, 0
    %19 = vsyncpa [#allocation5], 0
    %s20 = scalar_lea.sflag [#allocation5], 1
    %21 = vsyncpa %s20, 0
    %22 = vsyncpa [#allocation8], 0
    %s23 = scalar_lea.sflag [#allocation8], 1
    %24 = vsyncpa %s23, 0
    loop: start=0, step=1, limit=4
    $region2: #{tpu_custom_call.1} parent=1 // loop_pre_header
      _
    $region3: #{tpu_custom_call.1} parent=1 // loop_header
      %s26 = sphi 0, %s30
      %p27 = scmp.ge.s32.totalorder %s26, 4
      %s36 = sphi 0, %s38
      %s39 = sphi 0, %s36
      %s40 = sphi 0, %s39
      %s56 = sphi 0, %s40
      %s62 = sphi 0, %s64
      %s65 = sphi 0, %s62
      %s66 = sphi 0, %s65
      %s82 = sphi 0, %s66
      %s88 = sphi 0, %s90
      %s91 = sphi 0, %s88
      %s92 = sphi 0, %s91
      %s108 = sphi 0, %s92
      %s112 = sphi 0, %s112
      %s114 = sphi 0, %s112
      %s115 = sphi 0, %s114
      %s129 = sphi 0, %s115
      %s135 = sphi 0, %s137
      %s138 = sphi 0, %s135
      %s139 = sphi 0, %s138
      %s155 = sphi 0, %s139
      %s161 = sphi 0, %s163
      %s164 = sphi 0, %s161
      %s165 = sphi 0, %s164
      %s181 = sphi 0, %s165
      %s187 = sphi 0, %s189
      %s190 = sphi 0, %s187
      %s191 = sphi 0, %s190
      %s207 = sphi 0, %s191
      %s213 = sphi 0, %s215
      %s216 = sphi 0, %s213
      %s217 = sphi 0, %s216
      %s233 = sphi 0, %s217
      %s239 = sphi 0, %s241
      %s242 = sphi 0, %s239
      %s243 = sphi 0, %s242
      %s259 = sphi 0, %s243
      %s265 = sphi 0, %s267
      %s268 = sphi 0, %s265
      %s269 = sphi 0, %s268
      %s285 = sphi 0, %s269
      %s291 = sphi 0, %s293
      %s294 = sphi 0, %s291
      %s295 = sphi 0, %s294
      %s311 = sphi 0, %s295
    $region4: #{tpu_custom_call.1} parent=1 // loop_header_branch
      %29 = sbr.rel (%p27) target = $region8
    $region5: #{tpu_custom_call.1} parent=1 // loop_body
      %s31 = ssub.s32 %s26, 1
      %s32 = ssub.s32 %s26, 2
      %s33 = sadd.s32 %s26, 1
      %s34 = ssub.s32 %s26, %s33
      %p35 = scmp.eq.s32.totalorder %s34, 0
      %s37 = sadd.s32 %s36, 1
      %s38 = scalar_select %p35, %s36, %s37
      %p41 = pneg %p35
      %p42 = scmp.eq.s32.totalorder %s26, 1
      %p43 = por %p41, %p42
      %p44 = scmp.ne.s32.totalorder %s36, %s39
      %p45 = scmp.eq.s32.totalorder %s26, 0
      %p46 = por %p44, %p45
      %p47 = scmp.ne.s32.totalorder %s36, %s39
      %p48 = scmp.eq.s32.totalorder %s31, 1
      %p49 = por %p47, %p48
      %p50 = scmp.ne.s32.totalorder %s39, %s40
      %p51 = scmp.eq.s32.totalorder %s31, 0
      %p52 = por %p50, %p51
      %p53 = scmp.ne.s32.totalorder %s39, %s40
      %p54 = scmp.eq.s32.totalorder %s32, 1
      %p55 = por %p53, %p54
      %p57 = scmp.ne.s32.totalorder %s40, %s56
      %p58 = scmp.eq.s32.totalorder %s32, 0
      %p59 = por %p57, %p58
      %s60 = ssub.s32 %s26, %s33
      %p61 = scmp.eq.s32.totalorder %s60, 0
      %s63 = sadd.s32 %s62, 1
      %s64 = scalar_select %p61, %s62, %s63
      %p67 = pneg %p61
      %p68 = scmp.eq.s32.totalorder %s26, 1
      %p69 = por %p67, %p68
      %p70 = scmp.ne.s32.totalorder %s62, %s65
      %p71 = scmp.eq.s32.totalorder %s26, 0
      %p72 = por %p70, %p71
      %p73 = scmp.ne.s32.totalorder %s62, %s65
      %p74 = scmp.eq.s32.totalorder %s31, 1
      %p75 = por %p73, %p74
      %p76 = scmp.ne.s32.totalorder %s65, %s66
      %p77 = scmp.eq.s32.totalorder %s31, 0
      %p78 = por %p76, %p77
      %p79 = scmp.ne.s32.totalorder %s65, %s66
      %p80 = scmp.eq.s32.totalorder %s32, 1
      %p81 = por %p79, %p80
      %p83 = scmp.ne.s32.totalorder %s66, %s82
      %p84 = scmp.eq.s32.totalorder %s32, 0
      %p85 = por %p83, %p84
      %s86 = ssub.s32 %s26, %s33
      %p87 = scmp.eq.s32.totalorder %s86, 0
      %s89 = sadd.s32 %s88, 1
      %s90 = scalar_select %p87, %s88, %s89
      %p93 = pneg %p87
      %p94 = scmp.eq.s32.totalorder %s26, 1
      %p95 = por %p93, %p94
      %p96 = scmp.ne.s32.totalorder %s88, %s91
      %p97 = scmp.eq.s32.totalorder %s26, 0
      %p98 = por %p96, %p97
      %p99 = scmp.ne.s32.totalorder %s88, %s91
      %p100 = scmp.eq.s32.totalorder %s31, 1
      %p101 = por %p99, %p100
      %p102 = scmp.ne.s32.totalorder %s91, %s92
      %p103 = scmp.eq.s32.totalorder %s31, 0
      %p104 = por %p102, %p103
      %p105 = scmp.ne.s32.totalorder %s91, %s92
      %p106 = scmp.eq.s32.totalorder %s32, 1
      %p107 = por %p105, %p106
      %p109 = scmp.ne.s32.totalorder %s92, %s108
      %p110 = scmp.eq.s32.totalorder %s32, 0
      %p111 = por %p109, %p110
      %s113 = sadd.s32 %s112, 1
      %p116 = scmp.eq.s32.totalorder %s26, 1
      %p117 = scmp.ne.s32.totalorder %s112, %s114
      %p118 = scmp.eq.s32.totalorder %s26, 0
      %p119 = por %p117, %p118
      %p120 = scmp.ne.s32.totalorder %s112, %s114
      %p121 = scmp.eq.s32.totalorder %s31, 1
      %p122 = por %p120, %p121
      %p123 = scmp.ne.s32.totalorder %s114, %s115
      %p124 = scmp.eq.s32.totalorder %s31, 0
      %p125 = por %p123, %p124
      %p126 = scmp.ne.s32.totalorder %s114, %s115
      %p127 = scmp.eq.s32.totalorder %s32, 1
      %p128 = por %p126, %p127
      %p130 = scmp.ne.s32.totalorder %s115, %s129
      %p131 = scmp.eq.s32.totalorder %s32, 0
      %p132 = por %p130, %p131
      %s133 = ssub.s32 %s26, %s33
      %p134 = scmp.eq.s32.totalorder %s133, 0
      %s136 = sadd.s32 %s135, 1
      %s137 = scalar_select %p134, %s135, %s136
      %p140 = pneg %p134
      %p141 = scmp.eq.s32.totalorder %s26, 1
      %p142 = por %p140, %p141
      %p143 = scmp.ne.s32.totalorder %s135, %s138
      %p144 = scmp.eq.s32.totalorder %s26, 0
      %p145 = por %p143, %p144
      %p146 = scmp.ne.s32.totalorder %s135, %s138
      %p147 = scmp.eq.s32.totalorder %s31, 1
      %p148 = por %p146, %p147
      %p149 = scmp.ne.s32.totalorder %s138, %s139
      %p150 = scmp.eq.s32.totalorder %s31, 0
      %p151 = por %p149, %p150
      %p152 = scmp.ne.s32.totalorder %s138, %s139
      %p153 = scmp.eq.s32.totalorder %s32, 1
      %p154 = por %p152, %p153
      %p156 = scmp.ne.s32.totalorder %s139, %s155
      %p157 = scmp.eq.s32.totalorder %s32, 0
      %p158 = por %p156, %p157
      %s159 = ssub.s32 %s26, %s33
      %p160 = scmp.eq.s32.totalorder %s159, 0
      %s162 = sadd.s32 %s161, 1
      %s163 = scalar_select %p160, %s161, %s162
      %p166 = pneg %p160
      %p167 = scmp.eq.s32.totalorder %s26, 1
      %p168 = por %p166, %p167
      %p169 = scmp.ne.s32.totalorder %s161, %s164
      %p170 = scmp.eq.s32.totalorder %s26, 0
      %p171 = por %p169, %p170
      %p172 = scmp.ne.s32.totalorder %s161, %s164
      %p173 = scmp.eq.s32.totalorder %s31, 1
      %p174 = por %p172, %p173
      %p175 = scmp.ne.s32.totalorder %s164, %s165
      %p176 = scmp.eq.s32.totalorder %s31, 0
      %p177 = por %p175, %p176
      %p178 = scmp.ne.s32.totalorder %s164, %s165
      %p179 = scmp.eq.s32.totalorder %s32, 1
      %p180 = por %p178, %p179
      %p182 = scmp.ne.s32.totalorder %s165, %s181
      %p183 = scmp.eq.s32.totalorder %s32, 0
      %p184 = por %p182, %p183
      %s185 = ssub.s32 %s26, %s33
      %p186 = scmp.eq.s32.totalorder %s185, 0
      %s188 = sadd.s32 %s187, 1
      %s189 = scalar_select %p186, %s187, %s188
      %p192 = pneg %p186
      %p193 = scmp.eq.s32.totalorder %s26, 1
      %p194 = por %p192, %p193
      %p195 = scmp.ne.s32.totalorder %s187, %s190
      %p196 = scmp.eq.s32.totalorder %s26, 0
      %p197 = por %p195, %p196
      %p198 = scmp.ne.s32.totalorder %s187, %s190
      %p199 = scmp.eq.s32.totalorder %s31, 1
      %p200 = por %p198, %p199
      %p201 = scmp.ne.s32.totalorder %s190, %s191
      %p202 = scmp.eq.s32.totalorder %s31, 0
      %p203 = por %p201, %p202
      %p204 = scmp.ne.s32.totalorder %s190, %s191
      %p205 = scmp.eq.s32.totalorder %s32, 1
      %p206 = por %p204, %p205
      %p208 = scmp.ne.s32.totalorder %s191, %s207
      %p209 = scmp.eq.s32.totalorder %s32, 0
      %p210 = por %p208, %p209
      %s211 = ssub.s32 %s26, %s33
      %p212 = scmp.eq.s32.totalorder %s211, 0
      %s214 = sadd.s32 %s213, 1
      %s215 = scalar_select %p212, %s213, %s214
      %p218 = pneg %p212
      %p219 = scmp.eq.s32.totalorder %s26, 1
      %p220 = por %p218, %p219
      %p221 = scmp.ne.s32.totalorder %s213, %s216
      %p222 = scmp.eq.s32.totalorder %s26, 0
      %p223 = por %p221, %p222
      %p224 = scmp.ne.s32.totalorder %s213, %s216
      %p225 = scmp.eq.s32.totalorder %s31, 1
      %p226 = por %p224, %p225
      %p227 = scmp.ne.s32.totalorder %s216, %s217
      %p228 = scmp.eq.s32.totalorder %s31, 0
      %p229 = por %p227, %p228
      %p230 = scmp.ne.s32.totalorder %s216, %s217
      %p231 = scmp.eq.s32.totalorder %s32, 1
      %p232 = por %p230, %p231
      %p234 = scmp.ne.s32.totalorder %s217, %s233
      %p235 = scmp.eq.s32.totalorder %s32, 0
      %p236 = por %p234, %p235
      %s237 = ssub.s32 %s26, %s33
      %p238 = scmp.eq.s32.totalorder %s237, 0
      %s240 = sadd.s32 %s239, 1
      %s241 = scalar_select %p238, %s239, %s240
      %p244 = pneg %p238
      %p245 = scmp.eq.s32.totalorder %s26, 1
      %p246 = por %p244, %p245
      %p247 = scmp.ne.s32.totalorder %s239, %s242
      %p248 = scmp.eq.s32.totalorder %s26, 0
      %p249 = por %p247, %p248
      %p250 = scmp.ne.s32.totalorder %s239, %s242
      %p251 = scmp.eq.s32.totalorder %s31, 1
      %p252 = por %p250, %p251
      %p253 = scmp.ne.s32.totalorder %s242, %s243
      %p254 = scmp.eq.s32.totalorder %s31, 0
      %p255 = por %p253, %p254
      %p256 = scmp.ne.s32.totalorder %s242, %s243
      %p257 = scmp.eq.s32.totalorder %s32, 1
      %p258 = por %p256, %p257
      %p260 = scmp.ne.s32.totalorder %s243, %s259
      %p261 = scmp.eq.s32.totalorder %s32, 0
      %p262 = por %p260, %p261
      %s263 = ssub.s32 %s26, %s33
      %p264 = scmp.eq.s32.totalorder %s263, 0
      %s266 = sadd.s32 %s265, 1
      %s267 = scalar_select %p264, %s265, %s266
      %p270 = pneg %p264
      %p271 = scmp.eq.s32.totalorder %s26, 1
      %p272 = por %p270, %p271
      %p273 = scmp.ne.s32.totalorder %s265, %s268
      %p274 = scmp.eq.s32.totalorder %s26, 0
      %p275 = por %p273, %p274
      %p276 = scmp.ne.s32.totalorder %s265, %s268
      %p277 = scmp.eq.s32.totalorder %s31, 1
      %p278 = por %p276, %p277
      %p279 = scmp.ne.s32.totalorder %s268, %s269
      %p280 = scmp.eq.s32.totalorder %s31, 0
      %p281 = por %p279, %p280
      %p282 = scmp.ne.s32.totalorder %s268, %s269
      %p283 = scmp.eq.s32.totalorder %s32, 1
      %p284 = por %p282, %p283
      %p286 = scmp.ne.s32.totalorder %s269, %s285
      %p287 = scmp.eq.s32.totalorder %s32, 0
      %p288 = por %p286, %p287
      %s289 = ssub.s32 %s26, %s33
      %p290 = scmp.eq.s32.totalorder %s289, 0
      %s292 = sadd.s32 %s291, 1
      %s293 = scalar_select %p290, %s291, %s292
      %p296 = pneg %p290
      %p297 = scmp.eq.s32.totalorder %s26, 1
      %p298 = por %p296, %p297
      %p299 = scmp.ne.s32.totalorder %s291, %s294
      %p300 = scmp.eq.s32.totalorder %s26, 0
      %p301 = por %p299, %p300
      %p302 = scmp.ne.s32.totalorder %s291, %s294
      %p303 = scmp.eq.s32.totalorder %s31, 1
      %p304 = por %p302, %p303
      %p305 = scmp.ne.s32.totalorder %s294, %s295
      %p306 = scmp.eq.s32.totalorder %s31, 0
      %p307 = por %p305, %p306
      %p308 = scmp.ne.s32.totalorder %s294, %s295
      %p309 = scmp.eq.s32.totalorder %s32, 1
      %p310 = por %p308, %p309
      %p312 = scmp.ne.s32.totalorder %s295, %s311
      %p313 = scmp.eq.s32.totalorder %s32, 0
      %p314 = por %p312, %p313
      %p315 = scmp.le.s32.totalorder 1, %s26
      %p316 = scmp.lt.s32.totalorder %s26, 3
      %p317 = pnand %p315, %p316
      %p318 = pneg %p317
      // Predicated region
      $region9: #{tpu_custom_call.1} parent=5 // pred_check
        _
      $region10: #{tpu_custom_call.1} parent=5 // pred_check_branch
        %320 = sbr.rel (%p317) target = $region12
      $region11: #{tpu_custom_call.1} parent=5 // pred_region
        %s321 = ssub.s32 %s26, 1
        // Predicated region
        $region13: #{tpu_custom_call.1} parent=11 // pred_check
          %p322 = pneg %p125
        $region14: #{tpu_custom_call.1} parent=11 // pred_check_branch
          %324 = sbr.rel (%p322) target = $region16
        $region15: #{tpu_custom_call.1} parent=11 // pred_region
          _
        $region16: #{tpu_custom_call.1} parent=11 // pred_fallthru
          _
      $region12: #{tpu_custom_call.1} parent=5 // pred_fallthru
        _
      %p325 = scmp.lt.s32.totalorder %s26, 2
      // Predicated region
      $region17: #{tpu_custom_call.1} parent=5 // pred_check
        %p326 = pneg %p325
      $region18: #{tpu_custom_call.1} parent=5 // pred_check_branch
        %328 = sbr.rel (%p326) target = $region20
      $region19: #{tpu_custom_call.1} parent=5 // pred_region
        // Predicated region
        $region21: #{tpu_custom_call.1} parent=19 // pred_check
          %p329 = pneg %p46
        $region22: #{tpu_custom_call.1} parent=19 // pred_check_branch
          %331 = sbr.rel (%p329) target = $region24
        $region23: #{tpu_custom_call.1} parent=19 // pred_region
          %p332 = scmp.lt.s32.totalorder %s26, 1
          %s333 = scalar_select %p332, %s26, 1
          %s334 = smul.addr %s333, 2
          %s335 = smul.addr %s334, 2
          %s336 = scalar_lea.vmem %s0, %s335
        $region24: #{tpu_custom_call.1} parent=19 // pred_fallthru
          _
        // Predicated region
        $region25: #{tpu_custom_call.1} parent=19 // pred_check
          %p337 = pneg %p72
        $region26: #{tpu_custom_call.1} parent=19 // pred_check_branch
          %339 = sbr.rel (%p337) target = $region28
        $region27: #{tpu_custom_call.1} parent=19 // pred_region
          %p340 = scmp.lt.s32.totalorder %s26, 1
          %s341 = scalar_select %p340, %s26, 1
          %s342 = smul.addr %s341, 2
          %s343 = scalar_lea.vmem %s1, %s342
        $region28: #{tpu_custom_call.1} parent=19 // pred_fallthru
          _
        // Predicated region
        $region29: #{tpu_custom_call.1} parent=19 // pred_check
          %p344 = pneg %p98
        $region30: #{tpu_custom_call.1} parent=19 // pred_check_branch
          %346 = sbr.rel (%p344) target = $region32
        $region31: #{tpu_custom_call.1} parent=19 // pred_region
          %p347 = scmp.lt.s32.totalorder %s26, 1
          %s348 = scalar_select %p347, %s26, 1
          %s349 = smul.addr %s348, 2
          %s350 = scalar_lea.vmem %s2, %s349
        $region32: #{tpu_custom_call.1} parent=19 // pred_fallthru
          _
        // Predicated region
        $region33: #{tpu_custom_call.1} parent=19 // pred_check
          %p351 = pneg %p145
        $region34: #{tpu_custom_call.1} parent=19 // pred_check_branch
          %353 = sbr.rel (%p351) target = $region36
        $region35: #{tpu_custom_call.1} parent=19 // pred_region
          %p354 = scmp.lt.s32.totalorder %s26, 1
          %s355 = scalar_select %p354, %s26, 1
          %s356 = smul.addr %s355, 2
          %s357 = smul.addr %s356, 4
          %s358 = scalar_lea.vmem %s4, %s357
        $region36: #{tpu_custom_call.1} parent=19 // pred_fallthru
          _
        // Predicated region
        $region37: #{tpu_custom_call.1} parent=19 // pred_check
          %p359 = pneg %p171
        $region38: #{tpu_custom_call.1} parent=19 // pred_check_branch
          %361 = sbr.rel (%p359) target = $region40
        $region39: #{tpu_custom_call.1} parent=19 // pred_region
          %p362 = scmp.lt.s32.totalorder %s26, 1
          %s363 = scalar_select %p362, %s26, 1
          %s364 = smul.addr %s363, 114
          %s365 = smul.addr %s364, 8
          %s366 = scalar_lea.vmem %s5, %s365
        $region40: #{tpu_custom_call.1} parent=19 // pred_fallthru
          _
        // Predicated region
        $region41: #{tpu_custom_call.1} parent=19 // pred_check
          %p367 = pneg %p197
        $region42: #{tpu_custom_call.1} parent=19 // pred_check_branch
          %369 = sbr.rel (%p367) target = $region44
        $region43: #{tpu_custom_call.1} parent=19 // pred_region
          %p370 = scmp.lt.s32.totalorder %s26, 1
          %s371 = scalar_select %p370, %s26, 1
          %s372 = smul.addr %s371, 32
          %s373 = smul.addr %s372, 8
          %s374 = scalar_lea.vmem %s6, %s373
        $region44: #{tpu_custom_call.1} parent=19 // pred_fallthru
          _
      $region20: #{tpu_custom_call.1} parent=5 // pred_fallthru
        _
      %p375 = scmp.le.s32.totalorder 1, %s26
      %p376 = scmp.lt.s32.totalorder %s26, 3
      %p377 = pnand %p375, %p376
      %p378 = pneg %p377
      // Predicated region
      $region45: #{tpu_custom_call.1} parent=5 // pred_check
        _
      $region46: #{tpu_custom_call.1} parent=5 // pred_check_branch
        %380 = sbr.rel (%p377) target = $region48
      $region47: #{tpu_custom_call.1} parent=5 // pred_region
        %s381 = ssub.s32 %s26, 1
        %p382 = scmp.lt.s32.totalorder %s31, 1
        %s383 = scalar_select %p382, %s31, 1
        %s384 = smul.addr %s383, 2
        %s385 = smul.addr %s384, 2
        %s386 = scalar_lea.vmem %s0, %s385
        %p387 = pneg %p52
        %p388 = pneg %p49
        %p389 = scmp.lt.s32.totalorder %s31, 1
        %s390 = scalar_select %p389, %s31, 1
        %s391 = smul.addr %s390, 2
        %s392 = scalar_lea.vmem %s1, %s391
        %p393 = pneg %p78
        %p394 = pneg %p75
        %p395 = scmp.lt.s32.totalorder %s31, 1
        %s396 = scalar_select %p395, %s31, 1
        %s397 = smul.addr %s396, 2
        %s398 = scalar_lea.vmem %s2, %s397
        %p399 = pneg %p104
        %p400 = pneg %p101
        %p401 = pneg %p125
        %p402 = pneg %p122
        %p403 = scmp.lt.s32.totalorder %s31, 1
        %s404 = scalar_select %p403, %s31, 1
        %s405 = smul.addr %s404, 2
        %s406 = smul.addr %s405, 4
        %s407 = scalar_lea.vmem %s4, %s406
        %p408 = pneg %p151
        %p409 = pneg %p148
        %p410 = scmp.lt.s32.totalorder %s31, 1
        %s411 = scalar_select %p410, %s31, 1
        %s412 = smul.addr %s411, 114
        %s413 = smul.addr %s412, 8
        %s414 = scalar_lea.vmem %s5, %s413
        %p415 = pneg %p177
        %p416 = pneg %p174
        %p417 = scmp.lt.s32.totalorder %s31, 1
        %s418 = scalar_select %p417, %s31, 1
        %s419 = smul.addr %s418, 32
        %s420 = smul.addr %s419, 8
        %s421 = scalar_lea.vmem %s6, %s420
        %p422 = pneg %p203
        %p423 = pneg %p200
        %p424 = pneg %p229
        %p425 = pneg %p226
        %s426 = sand.u32 %s216, 1
        %s427 = scalar_lea.sflag [#allocation3], %s426
        %s428 = sand.u32 %s216, 1
        %s429 = smul.addr %s428, 12
        %s430 = scalar_lea.vmem [#allocation2], %s429
        %p431 = pneg %p255
        %p432 = pneg %p252
        %s433 = sand.u32 %s31, 1
        %s434 = scalar_lea.sflag [#allocation5], %s433
        %s435 = sand.u32 %s242, 1
        %s436 = smul.addr %s435, 6
        %s437 = scalar_lea.vmem [#allocation4], %s436
        %p438 = pneg %p281
        %p439 = pneg %p278
        %s440 = sand.u32 %s31, 1
        %s441 = scalar_lea.sflag [#allocation5], %s440
        %s442 = sand.u32 %s268, 1
        %s443 = smul.addr %s442, 8
        %s444 = scalar_lea.vmem [#allocation6], %s443
        %p445 = pneg %p307
        %p446 = pneg %p304
        %s447 = sand.u32 %s294, 1
        %s448 = scalar_lea.sflag [#allocation8], %s447
        %s449 = sand.u32 %s294, 1
        %s450 = smul.addr %s449, 4
        %s451 = scalar_lea.vmem [#allocation7], %s450
        %p452 = scmp.lt.s32.totalorder %s31, 1
        %s453 = scalar_select %p452, %s31, 1
        %s454 = smul.addr %s453, 2
        %s455 = smul.addr %s454, 2
        %s456 = scalar_lea.vmem %s0, %s455
        %p457 = scmp.lt.s32.totalorder %s31, 1
        %s458 = scalar_select %p457, %s31, 1
        %s459 = smul.addr %s458, 2
        %s460 = scalar_lea.vmem %s1, %s459
        %p461 = scmp.lt.s32.totalorder %s31, 1
        %s462 = scalar_select %p461, %s31, 1
        %s463 = smul.addr %s462, 2
        %s464 = scalar_lea.vmem %s2, %s463
        %p465 = scmp.lt.s32.totalorder %s31, 1
        %s466 = scalar_select %p465, %s31, 1
        %s467 = smul.addr %s466, 2
        %s468 = smul.addr %s467, 4
        %s469 = scalar_lea.vmem %s4, %s468
        %p470 = scmp.lt.s32.totalorder %s31, 1
        %s471 = scalar_select %p470, %s31, 1
        %s472 = smul.addr %s471, 114
        %s473 = smul.addr %s472, 8
        %s474 = scalar_lea.vmem %s5, %s473
        %p475 = scmp.lt.s32.totalorder %s31, 1
        %s476 = scalar_select %p475, %s31, 1
        %s477 = smul.addr %s476, 32
        %s478 = smul.addr %s477, 8
        %s479 = scalar_lea.vmem %s6, %s478
        %v480 = vld [vmem:[%s456] sm:$0xf]
        %v481 = vld [vmem:[%s474] sm:$0xff]
        %v482 = vld [vmem:[%s474 + $0x8] sm:$0xff]
        %v483 = vld [vmem:[%s474 + $0x10] sm:$0xff]
        %v484 = vld [vmem:[%s474 + $0x18] sm:$0xff]
        %v485 = vld [vmem:[%s474 + $0x20] sm:$0xff]
        %v486 = vld [vmem:[%s474 + $0x28] sm:$0xff]
        %v487 = vld [vmem:[%s474 + $0x30] sm:$0xff]
        %v488 = vld [vmem:[%s474 + $0x38] sm:$0xff]
        %v489 = vld [vmem:[%s474 + $0x40] sm:$0xff]
        %v490 = vld [vmem:[%s474 + $0x48] sm:$0xff]
        %v491 = vld [vmem:[%s474 + $0x50] sm:$0xff]
        %v492 = vld [vmem:[%s474 + $0x58] sm:$0xff]
        %v493 = vld [vmem:[%s474 + $0x60] sm:$0xff]
        %v494 = vld [vmem:[%s474 + $0x68] sm:$0xff]
        %v495 = vld [vmem:[%s474 + $0x70] sm:$0xff]
        %v496 = vld [vmem:[%s474 + $0x78] sm:$0xff]
        %v497 = vld [vmem:[%s474 + $0x80] sm:$0xff]
        %v498 = vld [vmem:[%s474 + $0x88] sm:$0xff]
        %v499 = vld [vmem:[%s474 + $0x90] sm:$0xff]
        %v500 = vld [vmem:[%s474 + $0x98] sm:$0xff]
        %v501 = vld [vmem:[%s474 + $0xa0] sm:$0xff]
        %v502 = vld [vmem:[%s474 + $0xa8] sm:$0xff]
        %v503 = vld [vmem:[%s474 + $0xb0] sm:$0xff]
        %v504 = vld [vmem:[%s474 + $0xb8] sm:$0xff]
        %v505 = vld [vmem:[%s474 + $0xc0] sm:$0xff]
        %v506 = vld [vmem:[%s474 + $0xc8] sm:$0xff]
        %v507 = vld [vmem:[%s474 + $0xd0] sm:$0xff]
        %v508 = vld [vmem:[%s474 + $0xd8] sm:$0xff]
        %v509 = vld [vmem:[%s474 + $0xe0] sm:$0xff]
        %v510 = vld [vmem:[%s474 + $0xe8] sm:$0xff]
        %v511 = vld [vmem:[%s474 + $0xf0] sm:$0xff]
        %v512 = vld [vmem:[%s474 + $0xf8] sm:$0xff]
        %v513 = vld [vmem:[%s474 + $0x100] sm:$0xff]
        %v514 = vld [vmem:[%s474 + $0x108] sm:$0xff]
        %v515 = vld [vmem:[%s474 + $0x110] sm:$0xff]
        %v516 = vld [vmem:[%s474 + $0x118] sm:$0xff]
        %v517 = vld [vmem:[%s474 + $0x120] sm:$0xff]
        %v518 = vld [vmem:[%s474 + $0x128] sm:$0xff]
        %v519 = vld [vmem:[%s474 + $0x130] sm:$0xff]
        %v520 = vld [vmem:[%s474 + $0x138] sm:$0xff]
        %v521 = vld [vmem:[%s474 + $0x140] sm:$0xff]
        %v522 = vld [vmem:[%s474 + $0x148] sm:$0xff]
        %v523 = vld [vmem:[%s474 + $0x150] sm:$0xff]
        %v524 = vld [vmem:[%s474 + $0x158] sm:$0xff]
        %v525 = vld [vmem:[%s474 + $0x160] sm:$0xff]
        %v526 = vld [vmem:[%s474 + $0x168] sm:$0xff]
        %v527 = vld [vmem:[%s474 + $0x170] sm:$0xff]
        %v528 = vld [vmem:[%s474 + $0x178] sm:$0xff]
        %v529 = vld [vmem:[%s474 + $0x180] sm:$0xff]
        %v530 = vld [vmem:[%s474 + $0x188] sm:$0xff]
        %v531 = vld [vmem:[%s474 + $0x190] sm:$0xff]
        %v532 = vld [vmem:[%s474 + $0x198] sm:$0xff]
        %v533 = vld [vmem:[%s474 + $0x1a0] sm:$0xff]
        %v534 = vld [vmem:[%s474 + $0x1a8] sm:$0xff]
        %v535 = vld [vmem:[%s474 + $0x1b0] sm:$0xff]
        %v536 = vld [vmem:[%s474 + $0x1b8] sm:$0xff]
        %v537 = vld [vmem:[%s474 + $0x1c0] sm:$0xff]
        %v538 = vld [vmem:[%s474 + $0x1c8] sm:$0xff]
        %v539 = vld [vmem:[%s474 + $0x1d0] sm:$0xff]
        %v540 = vld [vmem:[%s474 + $0x1d8] sm:$0xff]
        %v541 = vld [vmem:[%s474 + $0x1e0] sm:$0xff]
        %v542 = vld [vmem:[%s474 + $0x1e8] sm:$0xff]
        %v543 = vld [vmem:[%s474 + $0x1f0] sm:$0xff]
        %v544 = vld [vmem:[%s474 + $0x1f8] sm:$0xff]
        %v545 = vld [vmem:[%s474 + $0x200] sm:$0xff]
        %v546 = vld [vmem:[%s474 + $0x208] sm:$0xff]
        %v547 = vld [vmem:[%s474 + $0x210] sm:$0xff]
        %v548 = vld [vmem:[%s474 + $0x218] sm:$0xff]
        %v549 = vld [vmem:[%s474 + $0x220] sm:$0xff]
        %v550 = vld [vmem:[%s474 + $0x228] sm:$0xff]
        %v551 = vld [vmem:[%s474 + $0x230] sm:$0xff]
        %v552 = vld [vmem:[%s474 + $0x238] sm:$0xff]
        %v553 = vld [vmem:[%s474 + $0x240] sm:$0xff]
        %v554 = vld [vmem:[%s474 + $0x248] sm:$0xff]
        %v555 = vld [vmem:[%s474 + $0x250] sm:$0xff]
        %v556 = vld [vmem:[%s474 + $0x258] sm:$0xff]
        %v557 = vld [vmem:[%s474 + $0x260] sm:$0xff]
        %v558 = vld [vmem:[%s474 + $0x268] sm:$0xff]
        %v559 = vld [vmem:[%s474 + $0x270] sm:$0xff]
        %v560 = vld [vmem:[%s474 + $0x278] sm:$0xff]
        %v561 = vld [vmem:[%s474 + $0x280] sm:$0xff]
        %v562 = vld [vmem:[%s474 + $0x288] sm:$0xff]
        %v563 = vld [vmem:[%s474 + $0x290] sm:$0xff]
        %v564 = vld [vmem:[%s474 + $0x298] sm:$0xff]
        %v565 = vld [vmem:[%s474 + $0x2a0] sm:$0xff]
        %v566 = vld [vmem:[%s474 + $0x2a8] sm:$0xff]
        %v567 = vld [vmem:[%s474 + $0x2b0] sm:$0xff]
        %v568 = vld [vmem:[%s474 + $0x2b8] sm:$0xff]
        %v569 = vld [vmem:[%s474 + $0x2c0] sm:$0xff]
        %v570 = vld [vmem:[%s474 + $0x2c8] sm:$0xff]
        %v571 = vld [vmem:[%s474 + $0x2d0] sm:$0xff]
        %v572 = vld [vmem:[%s474 + $0x2d8] sm:$0xff]
        %v573 = vld [vmem:[%s474 + $0x2e0] sm:$0xff]
        %v574 = vld [vmem:[%s474 + $0x2e8] sm:$0xff]
        %v575 = vld [vmem:[%s474 + $0x2f0] sm:$0xff]
        %v576 = vld [vmem:[%s474 + $0x2f8] sm:$0xff]
        %v577 = vld [vmem:[%s474 + $0x300] sm:$0xff]
        %v578 = vld [vmem:[%s474 + $0x308] sm:$0xff]
        %v579 = vld [vmem:[%s474 + $0x310] sm:$0xff]
        %v580 = vld [vmem:[%s474 + $0x318] sm:$0xff]
        %v581 = vld [vmem:[%s474 + $0x320] sm:$0xff]
        %v582 = vld [vmem:[%s474 + $0x328] sm:$0xff]
        %v583 = vld [vmem:[%s474 + $0x330] sm:$0xff]
        %v584 = vld [vmem:[%s474 + $0x338] sm:$0xff]
        %v585 = vld [vmem:[%s474 + $0x340] sm:$0xff]
        %v586 = vld [vmem:[%s474 + $0x348] sm:$0xff]
        %v587 = vld [vmem:[%s474 + $0x350] sm:$0xff]
        %v588 = vld [vmem:[%s474 + $0x358] sm:$0xff]
        %v589 = vld [vmem:[%s474 + $0x360] sm:$0x1]
        %v590 = vld [vmem:[%s474 + $0x368] sm:$0x1]
        %v591 = vld [vmem:[%s474 + $0x370] sm:$0x1]
        %v592 = vld [vmem:[%s474 + $0x378] sm:$0x1]
        %v593 = vld [vmem:[%s474 + $0x380] sm:$0x1]
        %v594 = vld [vmem:[%s474 + $0x388] sm:$0x1]
        %v597 = vunpack.c.l.s4 1983009808
        %v598 = vunpack.c.0.s8 %v597
        %v599 = vlaneseq
        %v600 = vshrl.u32 %v599, 7
        %v601 = vsub.s32 %v598, %v600
        %v602 = vrot.slane %v480, %v601
        %v603 = vcombine.high %v602, %v602
        %vm605 = vcmask 138240
        %v606 = vsel %vm605, %v603, 0
        %vm608 = vcmask 1040384
        %v610 = vsel %vm608, %v589, 0
        %v613 = vsel %vm608, %v590, 0
        %v616 = vsel %vm608, %v591, 0
        %v619 = vsel %vm608, %v592, 0
        %v622 = vsel %vm608, %v593, 0
        %v625 = vsel %vm608, %v594, 0
        %627 = vmatprep.subr.mxu0 %v482
        %628 = vmatpush1.msra.mxu0 %v481
        %629 = vmatprep.subr.mxu0 %v488
        %630 = vmatpush1.msra.mxu0 %v487
        %631 = vmatprep.subr.mxu0 %v494
        %632 = vmatpush1.msra.mxu0 %v493
        %633 = vmatprep.subr.mxu0 %v500
        %634 = vmatpush1.msra.mxu0 %v499
        %635 = vmatprep.subr.mxu0 %v506
        %636 = vmatpush1.msra.mxu0 %v505
        %637 = vmatprep.subr.mxu0 %v512
        %638 = vmatpush1.msra.mxu0 %v511
        %639 = vmatprep.subr.mxu0 %v518
        %640 = vmatpush1.msra.mxu0 %v517
        %641 = vmatprep.subr.mxu0 %v524
        %642 = vmatpush1.msra.mxu0 %v523
        %643 = vmatprep.subr.mxu0 %v530
        %644 = vmatpush1.msra.mxu0 %v529
        %645 = vmatprep.subr.mxu0 %v536
        %646 = vmatpush1.msra.mxu0 %v535
        %647 = vmatprep.subr.mxu0 %v542
        %648 = vmatpush1.msra.mxu0 %v541
        %649 = vmatprep.subr.mxu0 %v548
        %650 = vmatpush1.msra.mxu0 %v547
        %651 = vmatprep.subr.mxu0 %v554
        %652 = vmatpush1.msra.mxu0 %v553
        %653 = vmatprep.subr.mxu0 %v560
        %654 = vmatpush1.msra.mxu0 %v559
        %655 = vmatprep.subr.mxu0 %v566
        %656 = vmatpush1.msra.mxu0 %v565
        %657 = vmatprep.subr.mxu0 %v572
        %658 = vmatpush1.msra.mxu0 %v571
        %659 = vmatprep.subr.mxu0 %v578
        %660 = vmatpush1.msra.mxu0 %v577
        %661 = vmatprep.subr.mxu0 %v584
        %662 = vmatpush1.msra.mxu0 %v583
        %663 = vmatprep.subr.mxu0 %v613
        %664 = vmatpush1.msra.mxu0 %v610
        %665 = vmatprep.subr.mxu0 0.0
        %666 = vmatpush1.msra.mxu0 0.0
        %667 = vmatprep.subr.mxu0 0.0
        %668 = vmatpush1.msra.mxu0 0.0
        %669 = vmatprep.subr.mxu0 0.0
        %670 = vmatpush1.msra.mxu0 0.0
        %671 = vmatprep.subr.mxu0 0.0
        %672 = vmatpush1.msra.mxu0 0.0
        %673 = vmatprep.subr.mxu0 0.0
        %674 = vmatpush1.msra.mxu0 0.0
        %675 = vmatprep.subr.mxu0 0.0
        %676 = vmatpush1.msra.mxu0 0.0
        %677 = vmatprep.subr.mxu0 0.0
        %678 = vmatpush1.msra.mxu0 0.0
        %679 = vmatprep.subr.mxu0 0.0
        %680 = vmatpush1.msra.mxu0 0.0
        %681 = vmatprep.subr.mxu0 0.0
        %682 = vmatpush1.msra.mxu0 0.0
        %683 = vmatprep.subr.mxu0 0.0
        %684 = vmatpush1.msra.mxu0 0.0
        %685 = vmatprep.subr.mxu0 0.0
        %686 = vmatpush1.msra.mxu0 0.0
        %687 = vmatprep.subr.mxu0 0.0
        %688 = vmatpush1.msra.mxu0 0.0
        %689 = vmatprep.subr.mxu0 0.0
        %690 = vmatpush1.msra.mxu0 0.0
        %691 = vmatprep.mubr.f32.mxu0 %v606
        %692 = vmatmul.mubr.f32.gmra.mrb[0].mxu0 %v602
        %v693 = vpop.f32.mrb[0].mxu0
        %v694 = vadd.f32 0.0, %v693
        %v695 = vpop.f32.mrb[0].mxu0
        %v696 = vadd.f32 0.0, %v695
        %697 = vdwg.mxu0
        %698 = vmatprep.subr.mxu0 %v484
        %699 = vmatpush1.msra.mxu0 %v483
        %700 = vmatprep.subr.mxu0 %v490
        %701 = vmatpush1.msra.mxu0 %v489
        %702 = vmatprep.subr.mxu0 %v496
        %703 = vmatpush1.msra.mxu0 %v495
        %704 = vmatprep.subr.mxu0 %v502
        %705 = vmatpush1.msra.mxu0 %v501
        %706 = vmatprep.subr.mxu0 %v508
        %707 = vmatpush1.msra.mxu0 %v507
        %708 = vmatprep.subr.mxu0 %v514
        %709 = vmatpush1.msra.mxu0 %v513
        %710 = vmatprep.subr.mxu0 %v520
        %711 = vmatpush1.msra.mxu0 %v519
        %712 = vmatprep.subr.mxu0 %v526
        %713 = vmatpush1.msra.mxu0 %v525
        %714 = vmatprep.subr.mxu0 %v532
        %715 = vmatpush1.msra.mxu0 %v531
        %716 = vmatprep.subr.mxu0 %v538
        %717 = vmatpush1.msra.mxu0 %v537
        %718 = vmatprep.subr.mxu0 %v544
        %719 = vmatpush1.msra.mxu0 %v543
        %720 = vmatprep.subr.mxu0 %v550
        %721 = vmatpush1.msra.mxu0 %v549
        %722 = vmatprep.subr.mxu0 %v556
        %723 = vmatpush1.msra.mxu0 %v555
        %724 = vmatprep.subr.mxu0 %v562
        %725 = vmatpush1.msra.mxu0 %v561
        %726 = vmatprep.subr.mxu0 %v568
        %727 = vmatpush1.msra.mxu0 %v567
        %728 = vmatprep.subr.mxu0 %v574
        %729 = vmatpush1.msra.mxu0 %v573
        %730 = vmatprep.subr.mxu0 %v580
        %731 = vmatpush1.msra.mxu0 %v579
        %732 = vmatprep.subr.mxu0 %v586
        %733 = vmatpush1.msra.mxu0 %v585
        %734 = vmatprep.subr.mxu0 %v619
        %735 = vmatpush1.msra.mxu0 %v616
        %736 = vmatprep.subr.mxu0 0.0
        %737 = vmatpush1.msra.mxu0 0.0
        %738 = vmatprep.subr.mxu0 0.0
        %739 = vmatpush1.msra.mxu0 0.0
        %740 = vmatprep.subr.mxu0 0.0
        %741 = vmatpush1.msra.mxu0 0.0
        %742 = vmatprep.subr.mxu0 0.0
        %743 = vmatpush1.msra.mxu0 0.0
        %744 = vmatprep.subr.mxu0 0.0
        %745 = vmatpush1.msra.mxu0 0.0
        %746 = vmatprep.subr.mxu0 0.0
        %747 = vmatpush1.msra.mxu0 0.0
        %748 = vmatprep.subr.mxu0 0.0
        %749 = vmatpush1.msra.mxu0 0.0
        %750 = vmatprep.subr.mxu0 0.0
        %751 = vmatpush1.msra.mxu0 0.0
        %752 = vmatprep.subr.mxu0 0.0
        %753 = vmatpush1.msra.mxu0 0.0
        %754 = vmatprep.subr.mxu0 0.0
        %755 = vmatpush1.msra.mxu0 0.0
        %756 = vmatprep.subr.mxu0 0.0
        %757 = vmatpush1.msra.mxu0 0.0
        %758 = vmatprep.subr.mxu0 0.0
        %759 = vmatpush1.msra.mxu0 0.0
        %760 = vmatprep.subr.mxu0 0.0
        %761 = vmatpush1.msra.mxu0 0.0
        %762 = vmatprep.mubr.f32.mxu0 %v606
        %763 = vmatmul.mubr.f32.gmra.mrb[0].mxu0 %v602
        %v764 = vpop.f32.mrb[0].mxu0
        %v765 = vadd.f32 0.0, %v764
        %v766 = vpop.f32.mrb[0].mxu0
        %v767 = vadd.f32 0.0, %v766
        %768 = vdwg.mxu0
        %769 = vmatprep.subr.mxu0 %v486
        %770 = vmatpush1.msra.mxu0 %v485
        %771 = vmatprep.subr.mxu0 %v492
        %772 = vmatpush1.msra.mxu0 %v491
        %773 = vmatprep.subr.mxu0 %v498
        %774 = vmatpush1.msra.mxu0 %v497
        %775 = vmatprep.subr.mxu0 %v504
        %776 = vmatpush1.msra.mxu0 %v503
        %777 = vmatprep.subr.mxu0 %v510
        %778 = vmatpush1.msra.mxu0 %v509
        %779 = vmatprep.subr.mxu0 %v516
        %780 = vmatpush1.msra.mxu0 %v515
        %781 = vmatprep.subr.mxu0 %v522
        %782 = vmatpush1.msra.mxu0 %v521
        %783 = vmatprep.subr.mxu0 %v528
        %784 = vmatpush1.msra.mxu0 %v527
        %785 = vmatprep.subr.mxu0 %v534
        %786 = vmatpush1.msra.mxu0 %v533
        %787 = vmatprep.subr.mxu0 %v540
        %788 = vmatpush1.msra.mxu0 %v539
        %789 = vmatprep.subr.mxu0 %v546
        %790 = vmatpush1.msra.mxu0 %v545
        %791 = vmatprep.subr.mxu0 %v552
        %792 = vmatpush1.msra.mxu0 %v551
        %793 = vmatprep.subr.mxu0 %v558
        %794 = vmatpush1.msra.mxu0 %v557
        %795 = vmatprep.subr.mxu0 %v564
        %796 = vmatpush1.msra.mxu0 %v563
        %797 = vmatprep.subr.mxu0 %v570
        %798 = vmatpush1.msra.mxu0 %v569
        %799 = vmatprep.subr.mxu0 %v576
        %800 = vmatpush1.msra.mxu0 %v575
        %801 = vmatprep.subr.mxu0 %v582
        %802 = vmatpush1.msra.mxu0 %v581
        %803 = vmatprep.subr.mxu0 %v588
        %804 = vmatpush1.msra.mxu0 %v587
        %805 = vmatprep.subr.mxu0 %v625
        %806 = vmatpush1.msra.mxu0 %v622
        %807 = vmatprep.subr.mxu0 0.0
        %808 = vmatpush1.msra.mxu0 0.0
        %809 = vmatprep.subr.mxu0 0.0
        %810 = vmatpush1.msra.mxu0 0.0
        %811 = vmatprep.subr.mxu0 0.0
        %812 = vmatpush1.msra.mxu0 0.0
        %813 = vmatprep.subr.mxu0 0.0
        %814 = vmatpush1.msra.mxu0 0.0
        %815 = vmatprep.subr.mxu0 0.0
        %816 = vmatpush1.msra.mxu0 0.0
        %817 = vmatprep.subr.mxu0 0.0
        %818 = vmatpush1.msra.mxu0 0.0
        %819 = vmatprep.subr.mxu0 0.0
        %820 = vmatpush1.msra.mxu0 0.0
        %821 = vmatprep.subr.mxu0 0.0
        %822 = vmatpush1.msra.mxu0 0.0
        %823 = vmatprep.subr.mxu0 0.0
        %824 = vmatpush1.msra.mxu0 0.0
        %825 = vmatprep.subr.mxu0 0.0
        %826 = vmatpush1.msra.mxu0 0.0
        %827 = vmatprep.subr.mxu0 0.0
        %828 = vmatpush1.msra.mxu0 0.0
        %829 = vmatprep.subr.mxu0 0.0
        %830 = vmatpush1.msra.mxu0 0.0
        %831 = vmatprep.subr.mxu0 0.0
        %832 = vmatpush1.msra.mxu0 0.0
        %833 = vmatprep.mubr.f32.mxu0 %v606
        %834 = vmatmul.mubr.f32.gmra.mrb[0].mxu0 %v602
        %v835 = vpop.f32.mrb[0].mxu0
        %v836 = vadd.f32 0.0, %v835
        %v837 = vpop.f32.mrb[0].mxu0
        %v838 = vadd.f32 0.0, %v837
        %839 = vdwg.mxu0
        %v840 = vld [vmem:[%s469] sm:$0x77]
        %v842 = vlaneseq
        %v843 = vshrl.u32 %v842, 7
        %v844 = vsub.s32 0, %v843
        %v845 = vrot.slane %v840, %v844
        %v846 = vlaneseq
        %v847 = vshrl.u32 %v846, 7
        %v848 = vsub.s32 4, %v847
        %v849 = vrot.slane %v840, %v848
        %v852 = vlaneseq
        %v853 = vshrl.u32 %v852, 7
        %v854 = vsub.s32 0, %v853
        %v855 = vrot.slane %v845, %v854
        %v856 = vlaneseq
        %v857 = vshrl.u32 %v856, 7
        %v858 = vsub.s32 0, %v857
        %v859 = vrot.slane %v849, %v858
        %v860 = vadd.f32 %v855, %v694
        %v861 = vadd.f32 %v859, %v696
        %v862 = vlaneseq
        %v863 = vshrl.u32 %v862, 7
        %v864 = vsub.s32 1, %v863
        %v865 = vrot.slane %v840, %v864
        %v866 = vlaneseq
        %v867 = vshrl.u32 %v866, 7
        %v868 = vsub.s32 5, %v867
        %v869 = vrot.slane %v840, %v868
        %v872 = vlaneseq
        %v873 = vshrl.u32 %v872, 7
        %v874 = vsub.s32 1, %v873
        %v875 = vrot.slane %v865, %v874
        %v876 = vlaneseq
        %v877 = vshrl.u32 %v876, 7
        %v878 = vsub.s32 1, %v877
        %v879 = vrot.slane %v869, %v878
        %v880 = vadd.f32 %v875, %v765
        %v881 = vadd.f32 %v879, %v767
        %v882 = vlaneseq
        %v883 = vshrl.u32 %v882, 7
        %v884 = vsub.s32 2, %v883
        %v885 = vrot.slane %v840, %v884
        %v886 = vlaneseq
        %v887 = vshrl.u32 %v886, 7
        %v888 = vsub.s32 6, %v887
        %v889 = vrot.slane %v840, %v888
        %v892 = vlaneseq
        %v893 = vshrl.u32 %v892, 7
        %v894 = vsub.s32 2, %v893
        %v895 = vrot.slane %v885, %v894
        %v896 = vlaneseq
        %v897 = vshrl.u32 %v896, 7
        %v898 = vsub.s32 2, %v897
        %v899 = vrot.slane %v889, %v898
        %v900 = vadd.f32 %v895, %v836
        %v901 = vadd.f32 %v899, %v838
        %v904 = vrot.slane %v880, 6
        %v905 = vrot.slane %v881, 6
        %v910 = vrot.slane %v900, 4
        %v911 = vrot.slane %v901, 4
        %vm914 = vcmask 1041408
        %v915 = vsel %vm914, %v860, %v904
        %v916 = vsel %vm914, %v861, %v905
        %vm917 = vcmask 1043456
        %v918 = vsel %vm917, %v915, %v910
        %v919 = vsel %vm917, %v916, %v911
        %v920 = vld [vmem:[%s479] sm:$0xff]
        %v921 = vld [vmem:[%s479 + $0x8] sm:$0xff]
        %v922 = vld [vmem:[%s479 + $0x10] sm:$0xff]
        %v923 = vld [vmem:[%s479 + $0x18] sm:$0xff]
        %v924 = vld [vmem:[%s479 + $0x20] sm:$0xff]
        %v925 = vld [vmem:[%s479 + $0x28] sm:$0xff]
        %v926 = vld [vmem:[%s479 + $0x30] sm:$0xff]
        %v927 = vld [vmem:[%s479 + $0x38] sm:$0xff]
        %v928 = vld [vmem:[%s479 + $0x40] sm:$0xff]
        %v929 = vld [vmem:[%s479 + $0x48] sm:$0xff]
        %v930 = vld [vmem:[%s479 + $0x50] sm:$0xff]
        %v931 = vld [vmem:[%s479 + $0x58] sm:$0xff]
        %v932 = vld [vmem:[%s479 + $0x60] sm:$0xff]
        %v933 = vld [vmem:[%s479 + $0x68] sm:$0xff]
        %v934 = vld [vmem:[%s479 + $0x70] sm:$0xff]
        %v935 = vld [vmem:[%s479 + $0x78] sm:$0xff]
        %v936 = vld [vmem:[%s479 + $0x80] sm:$0xff]
        %v937 = vld [vmem:[%s479 + $0x88] sm:$0xff]
        %v938 = vld [vmem:[%s479 + $0x90] sm:$0xff]
        %v939 = vld [vmem:[%s479 + $0x98] sm:$0xff]
        %v940 = vld [vmem:[%s479 + $0xa0] sm:$0xff]
        %v941 = vld [vmem:[%s479 + $0xa8] sm:$0xff]
        %v942 = vld [vmem:[%s479 + $0xb0] sm:$0xff]
        %v943 = vld [vmem:[%s479 + $0xb8] sm:$0xff]
        %v944 = vld [vmem:[%s479 + $0xc0] sm:$0xff]
        %v945 = vld [vmem:[%s479 + $0xc8] sm:$0xff]
        %v946 = vld [vmem:[%s479 + $0xd0] sm:$0xff]
        %v947 = vld [vmem:[%s479 + $0xd8] sm:$0xff]
        %v948 = vld [vmem:[%s479 + $0xe0] sm:$0xff]
        %v949 = vld [vmem:[%s479 + $0xe8] sm:$0xff]
        %v950 = vld [vmem:[%s479 + $0xf0] sm:$0xff]
        %v951 = vld [vmem:[%s479 + $0xf8] sm:$0xff]
        %952 = vmatprep.subr.mxu0 0.0
        %953 = vmatpush1.msra.mxu0 %v920
        %954 = vmatprep.subr.mxu0 0.0
        %955 = vmatpush1.msra.mxu0 %v921
        %956 = vmatprep.subr.mxu0 0.0
        %957 = vmatpush1.msra.mxu0 %v922
        %958 = vmatprep.subr.mxu0 0.0
        %959 = vmatpush1.msra.mxu0 %v923
        %960 = vmatprep.subr.mxu0 0.0
        %961 = vmatpush1.msra.mxu0 %v924
        %962 = vmatprep.subr.mxu0 0.0
        %963 = vmatpush1.msra.mxu0 %v925
        %964 = vmatprep.subr.mxu0 0.0
        %965 = vmatpush1.msra.mxu0 %v926
        %966 = vmatprep.subr.mxu0 0.0
        %967 = vmatpush1.msra.mxu0 %v927
        %968 = vmatprep.subr.mxu0 0.0
        %969 = vmatpush1.msra.mxu0 %v928
        %970 = vmatprep.subr.mxu0 0.0
        %971 = vmatpush1.msra.mxu0 %v929
        %972 = vmatprep.subr.mxu0 0.0
        %973 = vmatpush1.msra.mxu0 %v930
        %974 = vmatprep.subr.mxu0 0.0
        %975 = vmatpush1.msra.mxu0 %v931
        %976 = vmatprep.subr.mxu0 0.0
        %977 = vmatpush1.msra.mxu0 %v932
        %978 = vmatprep.subr.mxu0 0.0
        %979 = vmatpush1.msra.mxu0 %v933
        %980 = vmatprep.subr.mxu0 0.0
        %981 = vmatpush1.msra.mxu0 %v934
        %982 = vmatprep.subr.mxu0 0.0
        %983 = vmatpush1.msra.mxu0 %v935
        %984 = vmatprep.subr.mxu0 0.0
        %985 = vmatpush1.msra.mxu0 %v936
        %986 = vmatprep.subr.mxu0 0.0
        %987 = vmatpush1.msra.mxu0 %v937
        %988 = vmatprep.subr.mxu0 0.0
        %989 = vmatpush1.msra.mxu0 %v938
        %990 = vmatprep.subr.mxu0 0.0
        %991 = vmatpush1.msra.mxu0 %v939
        %992 = vmatprep.subr.mxu0 0.0
        %993 = vmatpush1.msra.mxu0 %v940
        %994 = vmatprep.subr.mxu0 0.0
        %995 = vmatpush1.msra.mxu0 %v941
        %996 = vmatprep.subr.mxu0 0.0
        %997 = vmatpush1.msra.mxu0 %v942
        %998 = vmatprep.subr.mxu0 0.0
        %999 = vmatpush1.msra.mxu0 %v943
        %1000 = vmatprep.subr.mxu0 0.0
        %1001 = vmatpush1.msra.mxu0 %v944
        %1002 = vmatprep.subr.mxu0 0.0
        %1003 = vmatpush1.msra.mxu0 %v945
        %1004 = vmatprep.subr.mxu0 0.0
        %1005 = vmatpush1.msra.mxu0 %v946
        %1006 = vmatprep.subr.mxu0 0.0
        %1007 = vmatpush1.msra.mxu0 %v947
        %1008 = vmatprep.subr.mxu0 0.0
        %1009 = vmatpush1.msra.mxu0 %v948
        %1010 = vmatprep.subr.mxu0 0.0
        %1011 = vmatpush1.msra.mxu0 %v949
        %1012 = vmatprep.subr.mxu0 0.0
        %1013 = vmatpush1.msra.mxu0 %v950
        %1014 = vmatprep.subr.mxu0 0.0
        %1015 = vmatpush1.msra.mxu0 %v951
        %1016 = vmatprep.mubr.f32.mxu0 %v919
        %1017 = vmatmul.mubr.f32.gmra.mrb[0].mxu0 %v918
        %v1018 = vpop.f32.mrb[0].mxu0
        %v1019 = vadd.f32 0.0, %v1018
        %v1020 = vpop.f32.mrb[0].mxu0
        %1021 = vdwg.mxu0
        %v1022 = vld [vmem:[%s460] sm:$0x3]
        %1024 = vset.pattern.permute.xlu0 0
        %1025 = vperm.xlu0 %1024, %v1022
        %v1026 = vpop.permute.xlu0 %1025
        %v1028 = vmul.f32 %v1026, %v860
        %v1029 = vmul.f32 %v1026, %v861
        %1030 = vset.pattern.permute.xlu0 1
        %1031 = vperm.xlu0 %1030, %v1022
        %v1032 = vpop.permute.xlu0 %1031
        %v1034 = vmul.f32 %v1032, %v880
        %v1035 = vmul.f32 %v1032, %v881
        %v1036 = vadd.f32 %v1028, %v1034
        %v1037 = vadd.f32 %v1029, %v1035
        %1038 = vset.pattern.permute.xlu0 2
        %1039 = vperm.xlu0 %1038, %v1022
        %v1040 = vpop.permute.xlu0 %1039
        %v1042 = vmul.f32 %v1040, %v900
        %v1043 = vmul.f32 %v1040, %v901
        %v1044 = vadd.f32 %v1036, %v1042
        %v1045 = vadd.f32 %v1037, %v1043
        %1046 = vset.pattern.permute.xlu0 3
        %1047 = vperm.xlu0 %1046, %v1022
        %v1048 = vpop.permute.xlu0 %1047
        %v1050 = vmul.f32 %v1048, %v860
        %v1051 = vmul.f32 %v1048, %v861
        %1052 = vset.pattern.permute.xlu0 4
        %1053 = vperm.xlu0 %1052, %v1022
        %v1054 = vpop.permute.xlu0 %1053
        %v1056 = vmul.f32 %v1054, %v880
        %v1057 = vmul.f32 %v1054, %v881
        %v1058 = vadd.f32 %v1050, %v1056
        %v1059 = vadd.f32 %v1051, %v1057
        %1060 = vset.pattern.permute.xlu0 5
        %1061 = vperm.xlu0 %1060, %v1022
        %v1062 = vpop.permute.xlu0 %1061
        %v1064 = vmul.f32 %v1062, %v900
        %v1065 = vmul.f32 %v1062, %v901
        %v1066 = vadd.f32 %v1058, %v1064
        %v1067 = vadd.f32 %v1059, %v1065
        %1068 = vset.pattern.permute.xlu0 6
        %1069 = vperm.xlu0 %1068, %v1022
        %v1070 = vpop.permute.xlu0 %1069
        %v1072 = vmul.f32 %v1070, %v860
        %v1073 = vmul.f32 %v1070, %v861
        %1074 = vset.pattern.permute.xlu0 7
        %1075 = vperm.xlu0 %1074, %v1022
        %v1076 = vpop.permute.xlu0 %1075
        %v1078 = vmul.f32 %v1076, %v880
        %v1079 = vmul.f32 %v1076, %v881
        %v1080 = vadd.f32 %v1072, %v1078
        %v1081 = vadd.f32 %v1073, %v1079
        %1082 = vset.pattern.permute.xlu0 8
        %1083 = vperm.xlu0 %1082, %v1022
        %v1084 = vpop.permute.xlu0 %1083
        %v1086 = vmul.f32 %v1084, %v900
        %v1087 = vmul.f32 %v1084, %v901
        %v1088 = vadd.f32 %v1080, %v1086
        %v1089 = vadd.f32 %v1081, %v1087
        %v1090 = vmul.f32 %v1026, %v1019
        %v1092 = vrot.slane %v1019, 2
        %v1094 = vmul.f32 %v1032, %v1092
        %v1095 = vadd.f32 %v1090, %v1094
        %v1096 = vrot.slane %v1019, 4
        %v1098 = vmul.f32 %v1040, %v1096
        %v1099 = vadd.f32 %v1095, %v1098
        %v1100 = vmul.f32 %v1048, %v1019
        %v1101 = vmul.f32 %v1054, %v1092
        %v1102 = vadd.f32 %v1100, %v1101
        %v1103 = vmul.f32 %v1062, %v1096
        %v1104 = vadd.f32 %v1102, %v1103
        %v1105 = vmul.f32 %v1070, %v1019
        %v1106 = vmul.f32 %v1076, %v1092
        %v1107 = vadd.f32 %v1105, %v1106
        %v1108 = vmul.f32 %v1084, %v1096
        %v1109 = vadd.f32 %v1107, %v1108
        %v1110 = vld [vmem:[%s464] sm:$0x3]
        %1112 = vset.pattern.permute.xlu0 0
        %1113 = vperm.xlu0 %1112, %v1110
        %v1114 = vpop.permute.xlu0 %1113
        %v1116 = vadd.f32 %v1044, %v1114
        %v1117 = vadd.f32 %v1045, %v1114
        %1118 = vset.pattern.permute.xlu0 1
        %1119 = vperm.xlu0 %1118, %v1110
        %v1120 = vpop.permute.xlu0 %1119
        %v1122 = vadd.f32 %v1066, %v1120
        %v1123 = vadd.f32 %v1067, %v1120
        %1124 = vset.pattern.permute.xlu0 2
        %1125 = vperm.xlu0 %1124, %v1110
        %v1126 = vpop.permute.xlu0 %1125
        %v1128 = vadd.f32 %v1088, %v1126
        %v1129 = vadd.f32 %v1089, %v1126
        %v1130 = vadd.f32 %v1099, %v1114
        %v1131 = vadd.f32 %v1104, %v1120
        %v1132 = vadd.f32 %v1109, %v1126
        %v1133 = vld [vmem:[%s3] sm:$0x3]
        %1135 = vset.pattern.permute.xlu0 0
        %1136 = vperm.xlu0 %1135, %v1133
        %v1137 = vpop.permute.xlu0 %1136
        %v1139 = vmul.f32 %v1137, %v1116
        %v1140 = vmul.f32 %v1137, %v1117
        %1141 = vset.pattern.permute.xlu0 1
        %1142 = vperm.xlu0 %1141, %v1133
        %v1143 = vpop.permute.xlu0 %1142
        %v1145 = vmul.f32 %v1143, %v1122
        %v1146 = vmul.f32 %v1143, %v1123
        %v1147 = vadd.f32 %v1139, %v1145
        %v1148 = vadd.f32 %v1140, %v1146
        %1149 = vset.pattern.permute.xlu0 2
        %1150 = vperm.xlu0 %1149, %v1133
        %v1151 = vpop.permute.xlu0 %1150
        %v1153 = vmul.f32 %v1151, %v1128
        %v1154 = vmul.f32 %v1151, %v1129
        %v1155 = vadd.f32 %v1147, %v1153
        %v1156 = vadd.f32 %v1148, %v1154
        %1157 = vset.pattern.permute.xlu0 3
        %1158 = vperm.xlu0 %1157, %v1133
        %v1159 = vpop.permute.xlu0 %1158
        %v1161 = vmul.f32 %v1159, %v1116
        %v1162 = vmul.f32 %v1159, %v1117
        %1163 = vset.pattern.permute.xlu0 4
        %1164 = vperm.xlu0 %1163, %v1133
        %v1165 = vpop.permute.xlu0 %1164
        %v1167 = vmul.f32 %v1165, %v1122
        %v1168 = vmul.f32 %v1165, %v1123
        %v1169 = vadd.f32 %v1161, %v1167
        %v1170 = vadd.f32 %v1162, %v1168
        %1171 = vset.pattern.permute.xlu0 5
        %1172 = vperm.xlu0 %1171, %v1133
        %v1173 = vpop.permute.xlu0 %1172
        %v1175 = vmul.f32 %v1173, %v1128
        %v1176 = vmul.f32 %v1173, %v1129
        %v1177 = vadd.f32 %v1169, %v1175
        %v1178 = vadd.f32 %v1170, %v1176
        %1179 = vset.pattern.permute.xlu0 6
        %1180 = vperm.xlu0 %1179, %v1133
        %v1181 = vpop.permute.xlu0 %1180
        %v1183 = vmul.f32 %v1181, %v1116
        %v1184 = vmul.f32 %v1181, %v1117
        %1185 = vset.pattern.permute.xlu0 7
        %1186 = vperm.xlu0 %1185, %v1133
        %v1187 = vpop.permute.xlu0 %1186
        %v1189 = vmul.f32 %v1187, %v1122
        %v1190 = vmul.f32 %v1187, %v1123
        %v1191 = vadd.f32 %v1183, %v1189
        %v1192 = vadd.f32 %v1184, %v1190
        %1193 = vset.pattern.permute.xlu0 8
        %1194 = vperm.xlu0 %1193, %v1133
        %v1195 = vpop.permute.xlu0 %1194
        %v1197 = vmul.f32 %v1195, %v1128
        %v1198 = vmul.f32 %v1195, %v1129
        %v1199 = vadd.f32 %v1191, %v1197
        %v1200 = vadd.f32 %v1192, %v1198
        %v1201 = vrcp.pop %v1199
        %v1202 = vrcp.pop %v1200
        %v1203 = vmul.f32 %v1155, %v1201
        %v1204 = vmul.f32 %v1156, %v1202
        %v1205 = vmul.f32 %v1177, %v1201
        %v1206 = vmul.f32 %v1178, %v1202
        %v1207 = vmul.f32 %v1137, %v1130
        %v1208 = vmul.f32 %v1143, %v1131
        %v1209 = vadd.f32 %v1207, %v1208
        %v1210 = vmul.f32 %v1151, %v1132
        %v1211 = vadd.f32 %v1209, %v1210
        %v1212 = vmul.f32 %v1159, %v1130
        %v1213 = vmul.f32 %v1165, %v1131
        %v1214 = vadd.f32 %v1212, %v1213
        %v1215 = vmul.f32 %v1173, %v1132
        %v1216 = vadd.f32 %v1214, %v1215
        %v1217 = vmul.f32 %v1181, %v1130
        %v1218 = vmul.f32 %v1187, %v1131
        %v1219 = vadd.f32 %v1217, %v1218
        %v1220 = vmul.f32 %v1195, %v1132
        %v1221 = vadd.f32 %v1219, %v1220
        %v1222 = vrcp.pop %v1221
        %v1223 = vmul.f32 %v1211, %v1222
        %v1224 = vmul.f32 %v1216, %v1222
        %v1227 = vcombine.low %v1116, %v1117
        %v1229 = vunpack.c.l.s4 1983009808
        %v1230 = vunpack.c.0.s8 %v1229
        %v1231 = vlaneseq
        %v1232 = vshrl.u32 %v1231, 7
        %v1233 = vsub.s32 %v1230, %v1232
        %v1234 = vrot.slane %v1227, %v1233
        %1236 = vst [vmem:[%s430] sm:$0xf] %v1234
        %v1239 = vcombine.low %v1122, %v1123
        %v1241 = vunpack.c.l.s4 1983009808
        %v1242 = vunpack.c.0.s8 %v1241
        %v1243 = vlaneseq
        %v1244 = vshrl.u32 %v1243, 7
        %v1245 = vsub.s32 %v1242, %v1244
        %v1246 = vrot.slane %v1239, %v1245
        %s1248 = scalar_lea.vmem %s430, 4 [#allocation2]
        %1249 = vst [vmem:[%s1248] sm:$0xf] %v1246
        %v1252 = vcombine.low %v1128, %v1129
        %v1254 = vunpack.c.l.s4 1983009808
        %v1255 = vunpack.c.0.s8 %v1254
        %v1256 = vlaneseq
        %v1257 = vshrl.u32 %v1256, 7
        %v1258 = vsub.s32 %v1255, %v1257
        %v1259 = vrot.slane %v1252, %v1258
        %s1261 = scalar_lea.vmem %s430, 8 [#allocation2]
        %1262 = vst [vmem:[%s1261] sm:$0xf] %v1259
        %1263 = vst [vmem:[%s437] sm:$0x3] %v1130
        %s1264 = scalar_lea.vmem %s437, 2 [#allocation4]
        %1265 = vst [vmem:[%s1264] sm:$0x3] %v1131
        %s1266 = scalar_lea.vmem %s437, 4 [#allocation4]
        %1267 = vst [vmem:[%s1266] sm:$0x3] %v1132
        %v1270 = vcombine.low %v1203, %v1204
        %v1272 = vunpack.c.l.s4 1983009808
        %v1273 = vunpack.c.0.s8 %v1272
        %v1274 = vlaneseq
        %v1275 = vshrl.u32 %v1274, 7
        %v1276 = vsub.s32 %v1273, %v1275
        %v1277 = vrot.slane %v1270, %v1276
        %1279 = vst [vmem:[%s444] sm:$0xf] %v1277
        %v1282 = vcombine.low %v1205, %v1206
        %v1284 = vunpack.c.l.s4 1983009808
        %v1285 = vunpack.c.0.s8 %v1284
        %v1286 = vlaneseq
        %v1287 = vshrl.u32 %v1286, 7
        %v1288 = vsub.s32 %v1285, %v1287
        %v1289 = vrot.slane %v1282, %v1288
        %s1291 = scalar_lea.vmem %s444, 4 [#allocation6]
        %1292 = vst [vmem:[%s1291] sm:$0xf] %v1289
        %1293 = vst [vmem:[%s451] sm:$0x3] %v1223
        %s1294 = scalar_lea.vmem %s451, 2 [#allocation7]
        %1295 = vst [vmem:[%s1294] sm:$0x3] %v1224
        %s1296 = sand.u32 %s216, 1
        %s1297 = scalar_lea.sflag [#allocation3], %s1296
        %s1298 = sand.u32 %s216, 1
        %s1299 = smul.addr %s1298, 12
        %s1300 = scalar_lea.vmem [#allocation2], %s1299
        %s1301 = sand.u32 %s31, 1
        %s1302 = scalar_lea.sflag [#allocation5], %s1301
        %s1303 = sand.u32 %s242, 1
        %s1304 = smul.addr %s1303, 6
        %s1305 = scalar_lea.vmem [#allocation4], %s1304
        %s1306 = sand.u32 %s31, 1
        %s1307 = scalar_lea.sflag [#allocation5], %s1306
        %s1308 = sand.u32 %s268, 1
        %s1309 = smul.addr %s1308, 8
        %s1310 = scalar_lea.vmem [#allocation6], %s1309
        %s1311 = sand.u32 %s294, 1
        %s1312 = scalar_lea.sflag [#allocation8], %s1311
        %s1313 = sand.u32 %s294, 1
        %s1314 = smul.addr %s1313, 4
        %s1315 = scalar_lea.vmem [#allocation7], %s1314
        // Predicated region
        $region49: #{tpu_custom_call.1} parent=47 // pred_check
          %p1316 = pneg %p226
        $region50: #{tpu_custom_call.1} parent=47 // pred_check_branch
          %1318 = sbr.rel (%p1316) target = $region52
        $region51: #{tpu_custom_call.1} parent=47 // pred_region
          %s1320 = ssub.s32 192, 192
          %1321 = vsyncadd %s1297, %s1320
          %s1322 = smul.addr %s31, 6
          %s1323 = smul.addr %s1322, 32
          %s1324 = scalar_lea.hbm %s7, %s1323
          %s1325 = sshll.u32 %s1300, 4
          %s1326 = int_to_ptr.vmem [resolvable:$true] %s1325
          %1331 = dma.vmem_to_hbm [thread:$0]  %s1326, 192, %s1324, %s1297, 64, 64, 4
        $region52: #{tpu_custom_call.1} parent=47 // pred_fallthru
          _
        // Predicated region
        $region53: #{tpu_custom_call.1} parent=47 // pred_check
          %p1332 = pneg %p252
        $region54: #{tpu_custom_call.1} parent=47 // pred_check_branch
          %1334 = sbr.rel (%p1332) target = $region56
        $region55: #{tpu_custom_call.1} parent=47 // pred_region
          %s1336 = ssub.s32 96, 96
          %1337 = vsyncadd %s1302, %s1336
          %s1338 = smul.addr %s31, 3
          %s1339 = smul.addr %s1338, 32
          %s1340 = scalar_lea.hbm %s8, %s1339
          %s1341 = sshll.u32 %s1305, 4
          %s1342 = int_to_ptr.vmem [resolvable:$true] %s1341
          %1347 = dma.vmem_to_hbm [thread:$0]  %s1342, 96, %s1340, %s1302, 32, 32, 2
        $region56: #{tpu_custom_call.1} parent=47 // pred_fallthru
          _
        // Predicated region
        $region57: #{tpu_custom_call.1} parent=47 // pred_check
          %p1348 = pneg %p278
        $region58: #{tpu_custom_call.1} parent=47 // pred_check_branch
          %1350 = sbr.rel (%p1348) target = $region60
        $region59: #{tpu_custom_call.1} parent=47 // pred_region
          %s1352 = ssub.s32 128, 128
          %1353 = vsyncadd %s1307, %s1352
          %s1354 = smul.addr %s31, 4
          %s1355 = smul.addr %s1354, 32
          %s1356 = scalar_lea.hbm %s9, %s1355
          %s1357 = sshll.u32 %s1310, 4
          %s1358 = int_to_ptr.vmem [resolvable:$true] %s1357
          %1363 = dma.vmem_to_hbm [thread:$0]  %s1358, 128, %s1356, %s1307, 64, 64, 4
        $region60: #{tpu_custom_call.1} parent=47 // pred_fallthru
          _
        // Predicated region
        $region61: #{tpu_custom_call.1} parent=47 // pred_check
          %p1364 = pneg %p304
        $region62: #{tpu_custom_call.1} parent=47 // pred_check_branch
          %1366 = sbr.rel (%p1364) target = $region64
        $region63: #{tpu_custom_call.1} parent=47 // pred_region
          %s1368 = ssub.s32 64, 64
          %1369 = vsyncadd %s1312, %s1368
          %s1370 = smul.addr %s31, 2
          %s1371 = smul.addr %s1370, 32
          %s1372 = scalar_lea.hbm %s10, %s1371
          %s1373 = sshll.u32 %s1315, 4
          %s1374 = int_to_ptr.vmem [resolvable:$true] %s1373
          %1379 = dma.vmem_to_hbm [thread:$0]  %s1374, 64, %s1372, %s1312, 32, 32, 2
        $region64: #{tpu_custom_call.1} parent=47 // pred_fallthru
          _
      $region48: #{tpu_custom_call.1} parent=5 // pred_fallthru
        _
      %p1380 = scmp.le.s32.totalorder 2, %s26
      // Predicated region
      $region65: #{tpu_custom_call.1} parent=5 // pred_check
        %p1381 = pneg %p1380
      $region66: #{tpu_custom_call.1} parent=5 // pred_check_branch
        %1383 = sbr.rel (%p1381) target = $region68
      $region67: #{tpu_custom_call.1} parent=5 // pred_region
        %s1384 = ssub.s32 %s26, 2
        // Predicated region
        $region69: #{tpu_custom_call.1} parent=67 // pred_check
          %p1385 = pneg %p232
        $region70: #{tpu_custom_call.1} parent=67 // pred_check_branch
          %1387 = sbr.rel (%p1385) target = $region72
        $region71: #{tpu_custom_call.1} parent=67 // pred_region
          %s1388 = sand.u32 %s217, 1
          %s1389 = scalar_lea.sflag [#allocation3], %s1388
          %s1390 = sand.u32 %s217, 1
          %s1391 = smul.addr %s1390, 12
          %s1392 = scalar_lea.vmem [#allocation2], %s1391
          %1393 = dma.done %s1389, 192
        $region72: #{tpu_custom_call.1} parent=67 // pred_fallthru
          _
        // Predicated region
        $region73: #{tpu_custom_call.1} parent=67 // pred_check
          %p1394 = pneg %p258
        $region74: #{tpu_custom_call.1} parent=67 // pred_check_branch
          %1396 = sbr.rel (%p1394) target = $region76
        $region75: #{tpu_custom_call.1} parent=67 // pred_region
          %s1397 = sand.u32 %s32, 1
          %s1398 = scalar_lea.sflag [#allocation5], %s1397
          %s1399 = sand.u32 %s243, 1
          %s1400 = smul.addr %s1399, 6
          %s1401 = scalar_lea.vmem [#allocation4], %s1400
          %1402 = dma.done %s1398, 96
        $region76: #{tpu_custom_call.1} parent=67 // pred_fallthru
          _
        // Predicated region
        $region77: #{tpu_custom_call.1} parent=67 // pred_check
          %p1403 = pneg %p284
        $region78: #{tpu_custom_call.1} parent=67 // pred_check_branch
          %1405 = sbr.rel (%p1403) target = $region80
        $region79: #{tpu_custom_call.1} parent=67 // pred_region
          %s1406 = sand.u32 %s32, 1
          %s1407 = scalar_lea.sflag [#allocation5], %s1406
          %s1408 = sand.u32 %s269, 1
          %s1409 = smul.addr %s1408, 8
          %s1410 = scalar_lea.vmem [#allocation6], %s1409
          %1411 = dma.done %s1407, 128
        $region80: #{tpu_custom_call.1} parent=67 // pred_fallthru
          _
        // Predicated region
        $region81: #{tpu_custom_call.1} parent=67 // pred_check
          %p1412 = pneg %p310
        $region82: #{tpu_custom_call.1} parent=67 // pred_check_branch
          %1414 = sbr.rel (%p1412) target = $region84
        $region83: #{tpu_custom_call.1} parent=67 // pred_region
          %s1415 = sand.u32 %s295, 1
          %s1416 = scalar_lea.sflag [#allocation8], %s1415
          %s1417 = sand.u32 %s295, 1
          %s1418 = smul.addr %s1417, 4
          %s1419 = scalar_lea.vmem [#allocation7], %s1418
          %1420 = dma.done %s1416, 64
        $region84: #{tpu_custom_call.1} parent=67 // pred_fallthru
          _
      $region68: #{tpu_custom_call.1} parent=5 // pred_fallthru
        _
    $region6: #{tpu_custom_call.1} parent=1 // loop_footer
      %s30 = sadd.s32 1, %s26
    $region7: #{tpu_custom_call.1} parent=1 // loop_footer_branch
      %25 = sbr.rel target = $region3
    $region8: #{tpu_custom_call.1} parent=1 // loop_exit
      _
    %1421 = vsyncpa [#allocation3], 1
    %s1422 = scalar_lea.sflag [#allocation3], 1
    %1423 = vsyncpa %s1422, 1
    %1424 = vsyncpa [#allocation5], 1
    %s1425 = scalar_lea.sflag [#allocation5], 1
    %1426 = vsyncpa %s1425, 1
    %1427 = vsyncpa [#allocation8], 1
    %s1428 = scalar_lea.sflag [#allocation8], 1
    %1429 = vsyncpa %s1428, 1

</llo_original>
